<compile_context>
chip_gen: v6e
topology: v6e:2x2x1
jax: 0.10.0
libtpu: 0.0.40
codegen_flags: <defaults>
</compile_context>

<pallas_src>
import functools

import jax
import jax.numpy as jnp
from jax import lax
from jax.experimental import pallas as pl
from jax.experimental.pallas import tpu as pltpu


def _sigmoid(t):
    # nn.Sigmoid in f32: EUP exp + exact divide (tight accuracy, EUP is idle).
    return 1.0 / (1.0 + jnp.exp(-t))


def _simam(v, *, inv_spatial, inv_nm1, e_lambda):
    """simam_module_3d on a (B*C, D*H*W) slab.

    Per-(b, c) spatial statistics are per-row lane reductions in f32
    (centered two-pass form, exactly like the PyTorch module); no MXU.
    """
    mu = jnp.sum(v, axis=1, keepdims=True) * inv_spatial        # (BC, 1)
    xm = v - mu
    xm2 = xm * xm
    sum_xm2 = jnp.sum(xm2, axis=1, keepdims=True)               # (BC, 1)
    inv_den = 1.0 / (4.0 * (sum_xm2 * inv_nm1 + e_lambda))      # (BC, 1)
    y = xm2 * inv_den + 0.5
    return v * _sigmoid(y)


def _fused_kernel(x_ref, pool_ref, km_ref, bias_ref, pc_ref, pct_ref,
                  gamma_ref, beta_ref, out_ref,
                  *, inv_spatial, inv_nm1, e_lambda, inv_bn_count, bn_eps):
    simam = functools.partial(_simam, inv_spatial=inv_spatial,
                              inv_nm1=inv_nm1, e_lambda=e_lambda)

    x1 = simam(x_ref[...])                                       # (BC, DHW) f32

    # 3x3x3 average pool, stride 1, zero pad 1, count_include_pad=True:
    # right-multiply by the exact 0/1 matrix S_D (x) S_H (x) S_W, then * 1/27.
    pooled = jnp.dot(x1, pool_ref[...],
                     preferred_element_type=jnp.float32) * (1.0 / 27.0)
    edge = x1 - pooled

    # 1x1x1 Conv3d over channels: (I_B (x) conv_w) @ edge + bias (DEFAULT prec).
    conv = jnp.dot(km_ref[...], edge,
                   preferred_element_type=jnp.float32) + bias_ref[...]

    # Training-mode BatchNorm3d batch statistics. Row sums over DHW are f32
    # lane reductions; the tiny per-channel fold / broadcast matmuls (N=2) run
    # at HIGHEST so no bf16 truncation enters the variance computation.
    row_s = jnp.sum(conv, axis=1, keepdims=True)                 # (BC, 1)
    row_q = jnp.sum(conv * conv, axis=1, keepdims=True)          # (BC, 1)
    chan = jnp.dot(pct_ref[...], jnp.concatenate([row_s, row_q], axis=1),
                   preferred_element_type=jnp.float32,
                   precision=lax.Precision.HIGHEST)              # (C, 2)
    mean_c = chan[:, 0:1] * inv_bn_count
    var_c = jnp.maximum(chan[:, 1:2] * inv_bn_count - mean_c * mean_c, 0.0)
    scale_c = gamma_ref[...] * lax.rsqrt(var_c + bn_eps)         # (C, 1)
    shift_c = beta_ref[...] - mean_c * scale_c                   # (C, 1)
    aff = jnp.dot(pc_ref[...], jnp.concatenate([scale_c, shift_c], axis=1),
                  preferred_element_type=jnp.float32,
                  precision=lax.Precision.HIGHEST)               # (BC, 2)

    weight = _sigmoid(conv * aff[:, 0:1] + aff[:, 1:2])
    out = x1 * weight + x1
    out_ref[...] = simam(out)


def make_diff_module_3d(conv_w, conv_b, bn_gamma, bn_beta, *, B, C, D, H, W,
                        e_lambda=1e-4, bn_eps=1e-5):
    """Build the forward fn; structured operands are precomputed once here."""
    f32, bf16 = jnp.float32, jnp.bfloat16
    BC, DHW = B * C, D * H * W   # demo: (8, 512) -> lane axis multiple of 128

    def tridiag(n):              # 0/1 "|i-j| <= 1" neighbor-sum matrix
        i = jnp.arange(n)
        return (jnp.abs(i[:, None] - i[None, :]) <= 1).astype(f32)

    # Exact 0/1 pooling operand (bf16 is exact for 0/1; halves its DMA bytes).
    pool_mat = jnp.kron(jnp.kron(tridiag(D), tridiag(H)),
                        tridiag(W)).astype(bf16)                  # (DHW, DHW)
    # Real-valued operands stay f32.
    km = jnp.kron(jnp.eye(B, dtype=f32), conv_w.astype(f32))      # (BC, BC)
    bias_col = jnp.tile(conv_b.astype(f32), B)[:, None]           # (BC, 1)
    # Per-channel fold/broadcast indicators (row r = b*C + c -> channel r % C).
    pc = (jnp.arange(BC)[:, None] % C == jnp.arange(C)[None, :]).astype(f32)
    pct = pc.T                                                    # (C, BC)
    gamma_c = bn_gamma.astype(f32)[:, None]                       # (C, 1)
    beta_c = bn_beta.astype(f32)[:, None]                         # (C, 1)

    kern = functools.partial(
        _fused_kernel,
        inv_spatial=1.0 / float(DHW),
        inv_nm1=1.0 / float(DHW - 1),
        e_lambda=float(e_lambda),
        inv_bn_count=1.0 / float(B * DHW),
        bn_eps=float(bn_eps),
    )

    fused = pl.pallas_call(
        kern,
        out_shape=jax.ShapeDtypeStruct((BC, DHW), f32),
        # No grid: one step on one TensorCore; all operands fit comfortably in
        # VMEM (~2 MiB total), well under the v7x 64 MiB / 32 MiB-scoped budget.
        compiler_params=pltpu.CompilerParams(
            vmem_limit_bytes=32 * 1024 * 1024),
    )

    @jax.jit
    def forward(x):
        x2 = x.reshape(BC, DHW).astype(f32)
        out2 = fused(x2, pool_mat, km, bias_col, pc, pct, gamma_c, beta_c)
        return out2.reshape(B, C, D, H, W)

    return forward


def _reference_forward(x, conv_w, conv_b, gamma, beta,
                       e_lambda=1e-4, bn_eps=1e-5):
    """Pure-JAX transcription of the PyTorch module, used for validation."""
    def simam(v):
        n = v.shape[2] * v.shape[3] * v.shape[4] - 1
        mu = jnp.mean(v, axis=(2, 3, 4), keepdims=True)
        xm2 = (v - mu) ** 2
        y = xm2 / (4.0 * (jnp.sum(xm2, axis=(2, 3, 4), keepdims=True) / n
                          + e_lambda)) + 0.5
        return v * jax.nn.sigmoid(y)

    x1 = simam(x)
    pooled = jax.lax.reduce_window(
        x1, 0.0, jax.lax.add, (1, 1, 3, 3, 3), (1, 1, 1, 1, 1),
        [(0, 0), (0, 0), (1, 1), (1, 1), (1, 1)]) / 27.0
    edge = x1 - pooled
    conv = (jnp.einsum("oc,bcdhw->bodhw", conv_w, edge)
            + conv_b[None, :, None, None, None])
    mean = jnp.mean(conv, axis=(0, 2, 3, 4), keepdims=True)
    var = jnp.mean((conv - mean) ** 2, axis=(0, 2, 3, 4), keepdims=True)
    bn = (gamma[None, :, None, None, None] * (conv - mean)
          * jax.lax.rsqrt(var + bn_eps) + beta[None, :, None, None, None])
    weight = jax.nn.sigmoid(bn)
    return simam(weight * x1 + x1)


if __name__ == "__main__":
    key = jax.random.PRNGKey(0)
    kx, kw, kb, kg, kbt = jax.random.split(key, 5)

    B, C, D, H, W = 2, 4, 4, 8, 16            # D*H*W = 512 -> lane-dense slabs
    x = jax.random.normal(kx, (B, C, D, H, W), jnp.float32)

    # Conv3d(C, C, kernel_size=1) weight (C, C, 1, 1, 1) stored as (C, C).
    conv_w = 0.5 * jax.random.normal(kw, (C, C), jnp.float32)
    conv_b = 0.1 * jax.random.normal(kb, (C,), jnp.float32)
    # Non-trivial BN affine params to exercise the full BN path.
    bn_gamma = 1.0 + 0.1 * jax.random.normal(kg, (C,), jnp.float32)
    bn_beta = 0.05 * jax.random.normal(kbt, (C,), jnp.float32)

    fwd = make_diff_module_3d(conv_w, conv_b, bn_gamma, bn_beta,
                              B=B, C=C, D=D, H=H, W=W)
    out = jax.block_until_ready(fwd(x))

    assert out.shape == (B, C, D, H, W)
    assert bool(jnp.all(jnp.isfinite(out)))

    # Validate against a pure-JAX transcription of the PyTorch module.  All
    # statistics are now f32, so the only bf16 effects are the DEFAULT-precision
    # pool / conv matmul operand truncations -> tolerance tightened to 1e-1.
    ref = _reference_forward(x, conv_w, conv_b, bn_gamma, bn_beta)
    max_err = float(jnp.max(jnp.abs(out - ref)))
    assert max_err < 1e-1, f"mismatch vs reference: {max_err}"

    print("KERNEL_OK")
</pallas_src>

<mosaic_0001>
module attributes {stable_mosaic.version = 11 : i64} {
  func.func @_fused_kernel(%arg0: memref<8x512xf32, #tpu.memory_space<vmem>>, %arg1: memref<512x512xbf16, #tpu.memory_space<vmem>>, %arg2: memref<8x8xf32, #tpu.memory_space<vmem>>, %arg3: memref<8x1xf32, #tpu.memory_space<vmem>>, %arg4: memref<8x4xf32, #tpu.memory_space<vmem>>, %arg5: memref<4x8xf32, #tpu.memory_space<vmem>>, %arg6: memref<4x1xf32, #tpu.memory_space<vmem>>, %arg7: memref<4x1xf32, #tpu.memory_space<vmem>>, %arg8: memref<8x512xf32, #tpu.memory_space<vmem>>) attributes {dimension_semantics = [], scalar_prefetch = 0 : i64, scratch_operands = 0 : i64, tpu.core_type = #tpu.core_type<tc>} {
    %c0 = arith.constant 0 : index
    %c0_0 = arith.constant 0 : index
    %0 = vector.load %arg0[%c0, %c0_0] : memref<8x512xf32, #tpu.memory_space<vmem>>, vector<8x512xf32>
    %cst = arith.constant dense<0.000000e+00> : vector<8xf32>
    %1 = vector.multi_reduction <add>, %0, %cst [1] : vector<8x512xf32> to vector<8xf32>
    %2 = vector.shape_cast %1 : vector<8xf32> to vector<8x1xf32>
    %cst_1 = arith.constant 0.001953125 : f32
    %3 = vector.broadcast %cst_1 : f32 to vector<8x1xf32>
    %4 = arith.mulf %2, %3 : vector<8x1xf32>
    %5 = vector.broadcast %4 : vector<8x1xf32> to vector<8x512xf32>
    %6 = arith.subf %0, %5 : vector<8x512xf32>
    %7 = arith.mulf %6, %6 : vector<8x512xf32>
    %cst_2 = arith.constant dense<0.000000e+00> : vector<8xf32>
    %8 = vector.multi_reduction <add>, %7, %cst_2 [1] : vector<8x512xf32> to vector<8xf32>
    %9 = vector.shape_cast %8 : vector<8xf32> to vector<8x1xf32>
    %cst_3 = arith.constant 0.00195694715 : f32
    %10 = vector.broadcast %cst_3 : f32 to vector<8x1xf32>
    %11 = arith.mulf %9, %10 : vector<8x1xf32>
    %cst_4 = arith.constant 9.99999974E-5 : f32
    %12 = vector.broadcast %cst_4 : f32 to vector<8x1xf32>
    %13 = arith.addf %11, %12 : vector<8x1xf32>
    %cst_5 = arith.constant 4.000000e+00 : f32
    %14 = vector.broadcast %cst_5 : f32 to vector<8x1xf32>
    %15 = arith.mulf %14, %13 : vector<8x1xf32>
    %cst_6 = arith.constant 1.000000e+00 : f32
    %16 = vector.broadcast %cst_6 : f32 to vector<8x1xf32>
    %17 = arith.divf %16, %15 : vector<8x1xf32>
    %18 = vector.broadcast %17 : vector<8x1xf32> to vector<8x512xf32>
    %19 = arith.mulf %7, %18 : vector<8x512xf32>
    %cst_7 = arith.constant 5.000000e-01 : f32
    %20 = vector.broadcast %cst_7 : f32 to vector<8x512xf32>
    %21 = arith.addf %19, %20 : vector<8x512xf32>
    %cst_8 = arith.constant 0.000000e+00 : f32
    %22 = vector.broadcast %cst_8 : f32 to vector<8x512xf32>
    %23 = arith.subf %22, %21 : vector<8x512xf32>
    %24 = math.exp %23 : vector<8x512xf32>
    %cst_9 = arith.constant 1.000000e+00 : f32
    %25 = vector.broadcast %cst_9 : f32 to vector<8x512xf32>
    %26 = arith.addf %25, %24 : vector<8x512xf32>
    %cst_10 = arith.constant 1.000000e+00 : f32
    %27 = vector.broadcast %cst_10 : f32 to vector<8x512xf32>
    %28 = arith.divf %27, %26 : vector<8x512xf32>
    %29 = arith.mulf %0, %28 : vector<8x512xf32>
    %c0_11 = arith.constant 0 : index
    %c0_12 = arith.constant 0 : index
    %30 = vector.load %arg1[%c0_11, %c0_12] : memref<512x512xbf16, #tpu.memory_space<vmem>>, vector<512x512xbf16>
    %cst_13 = arith.constant dense<0.000000e+00> : vector<8x512xf32>
    %31 = tpu.matmul %29, %30, %cst_13 {dimension_numbers = #tpu.dot_dimension_numbers<[1], [0], [0], [1], [0, 0, 1, 1], [], []>} : vector<8x512xf32>, vector<512x512xbf16>, vector<8x512xf32> -> vector<8x512xf32>
    %cst_14 = arith.constant 0.0370370373 : f32
    %32 = vector.broadcast %cst_14 : f32 to vector<8x512xf32>
    %33 = arith.mulf %31, %32 : vector<8x512xf32>
    %34 = arith.subf %29, %33 : vector<8x512xf32>
    %c0_15 = arith.constant 0 : index
    %c0_16 = arith.constant 0 : index
    %35 = vector.load %arg2[%c0_15, %c0_16] : memref<8x8xf32, #tpu.memory_space<vmem>>, vector<8x8xf32>
    %cst_17 = arith.constant dense<0.000000e+00> : vector<8x512xf32>
    %36 = tpu.matmul %35, %34, %cst_17 {dimension_numbers = #tpu.dot_dimension_numbers<[1], [0], [0], [1], [0, 0, 1, 1], [], []>} : vector<8x8xf32>, vector<8x512xf32>, vector<8x512xf32> -> vector<8x512xf32>
    %c0_18 = arith.constant 0 : index
    %c0_19 = arith.constant 0 : index
    %37 = vector.load %arg3[%c0_18, %c0_19] : memref<8x1xf32, #tpu.memory_space<vmem>>, vector<8x1xf32>
    %38 = vector.broadcast %37 : vector<8x1xf32> to vector<8x512xf32>
    %39 = arith.addf %36, %38 : vector<8x512xf32>
    %cst_20 = arith.constant dense<0.000000e+00> : vector<8xf32>
    %40 = vector.multi_reduction <add>, %39, %cst_20 [1] : vector<8x512xf32> to vector<8xf32>
    %41 = vector.shape_cast %40 : vector<8xf32> to vector<8x1xf32>
    %42 = arith.mulf %39, %39 : vector<8x512xf32>
    %cst_21 = arith.constant dense<0.000000e+00> : vector<8xf32>
    %43 = vector.multi_reduction <add>, %42, %cst_21 [1] : vector<8x512xf32> to vector<8xf32>
    %44 = vector.shape_cast %43 : vector<8xf32> to vector<8x1xf32>
    %c0_22 = arith.constant 0 : index
    %c0_23 = arith.constant 0 : index
    %45 = vector.load %arg5[%c0_22, %c0_23] : memref<4x8xf32, #tpu.memory_space<vmem>>, vector<4x8xf32>
    %46 = tpu.concatenate %41, %44 in 1 : vector<8x1xf32>, vector<8x1xf32> -> vector<8x2xf32>
    %cst_24 = arith.constant dense<0.000000e+00> : vector<4x2xf32>
    %47 = tpu.matmul %45, %46, %cst_24 {dimension_numbers = #tpu.dot_dimension_numbers<[1], [0], [0], [1], [0, 0, 1, 1], [], []>, precision = #tpu.contract_precision<fp32>} : vector<4x8xf32>, vector<8x2xf32>, vector<4x2xf32> -> vector<4x2xf32>
    %48 = vector.extract_strided_slice %47 {offsets = [0, 0], sizes = [4, 1], strides = [1, 1]} : vector<4x2xf32> to vector<4x1xf32>
    %cst_25 = arith.constant 9.765625E-4 : f32
    %49 = vector.broadcast %cst_25 : f32 to vector<4x1xf32>
    %50 = arith.mulf %48, %49 : vector<4x1xf32>
    %51 = vector.extract_strided_slice %47 {offsets = [0, 1], sizes = [4, 1], strides = [1, 1]} : vector<4x2xf32> to vector<4x1xf32>
    %cst_26 = arith.constant 9.765625E-4 : f32
    %52 = vector.broadcast %cst_26 : f32 to vector<4x1xf32>
    %53 = arith.mulf %51, %52 : vector<4x1xf32>
    %54 = arith.mulf %50, %50 : vector<4x1xf32>
    %55 = arith.subf %53, %54 : vector<4x1xf32>
    %cst_27 = arith.constant 0.000000e+00 : f32
    %56 = vector.broadcast %cst_27 : f32 to vector<4x1xf32>
    %57 = arith.maximumf %55, %56 : vector<4x1xf32>
    %c0_28 = arith.constant 0 : index
    %c0_29 = arith.constant 0 : index
    %58 = vector.load %arg6[%c0_28, %c0_29] : memref<4x1xf32, #tpu.memory_space<vmem>>, vector<4x1xf32>
    %cst_30 = arith.constant 9.99999974E-6 : f32
    %59 = vector.broadcast %cst_30 : f32 to vector<4x1xf32>
    %60 = arith.addf %57, %59 : vector<4x1xf32>
    %61 = math.rsqrt %60 : vector<4x1xf32>
    %62 = arith.mulf %58, %61 : vector<4x1xf32>
    %c0_31 = arith.constant 0 : index
    %c0_32 = arith.constant 0 : index
    %63 = vector.load %arg7[%c0_31, %c0_32] : memref<4x1xf32, #tpu.memory_space<vmem>>, vector<4x1xf32>
    %64 = arith.mulf %50, %62 : vector<4x1xf32>
    %65 = arith.subf %63, %64 : vector<4x1xf32>
    %c0_33 = arith.constant 0 : index
    %c0_34 = arith.constant 0 : index
    %66 = vector.load %arg4[%c0_33, %c0_34] : memref<8x4xf32, #tpu.memory_space<vmem>>, vector<8x4xf32>
    %67 = tpu.concatenate %62, %65 in 1 : vector<4x1xf32>, vector<4x1xf32> -> vector<4x2xf32>
    %cst_35 = arith.constant dense<0.000000e+00> : vector<8x2xf32>
    %68 = tpu.matmul %66, %67, %cst_35 {dimension_numbers = #tpu.dot_dimension_numbers<[1], [0], [0], [1], [0, 0, 1, 1], [], []>, precision = #tpu.contract_precision<fp32>} : vector<8x4xf32>, vector<4x2xf32>, vector<8x2xf32> -> vector<8x2xf32>
    %69 = vector.extract_strided_slice %68 {offsets = [0, 0], sizes = [8, 1], strides = [1, 1]} : vector<8x2xf32> to vector<8x1xf32>
    %70 = vector.broadcast %69 : vector<8x1xf32> to vector<8x512xf32>
    %71 = arith.mulf %39, %70 : vector<8x512xf32>
    %72 = vector.extract_strided_slice %68 {offsets = [0, 1], sizes = [8, 1], strides = [1, 1]} : vector<8x2xf32> to vector<8x1xf32>
    %73 = vector.broadcast %72 : vector<8x1xf32> to vector<8x512xf32>
    %74 = arith.addf %71, %73 : vector<8x512xf32>
    %cst_36 = arith.constant 0.000000e+00 : f32
    %75 = vector.broadcast %cst_36 : f32 to vector<8x512xf32>
    %76 = arith.subf %75, %74 : vector<8x512xf32>
    %77 = math.exp %76 : vector<8x512xf32>
    %cst_37 = arith.constant 1.000000e+00 : f32
    %78 = vector.broadcast %cst_37 : f32 to vector<8x512xf32>
    %79 = arith.addf %78, %77 : vector<8x512xf32>
    %cst_38 = arith.constant 1.000000e+00 : f32
    %80 = vector.broadcast %cst_38 : f32 to vector<8x512xf32>
    %81 = arith.divf %80, %79 : vector<8x512xf32>
    %82 = arith.mulf %29, %81 : vector<8x512xf32>
    %83 = arith.addf %82, %29 : vector<8x512xf32>
    %cst_39 = arith.constant dense<0.000000e+00> : vector<8xf32>
    %84 = vector.multi_reduction <add>, %83, %cst_39 [1] : vector<8x512xf32> to vector<8xf32>
    %85 = vector.shape_cast %84 : vector<8xf32> to vector<8x1xf32>
    %cst_40 = arith.constant 0.001953125 : f32
    %86 = vector.broadcast %cst_40 : f32 to vector<8x1xf32>
    %87 = arith.mulf %85, %86 : vector<8x1xf32>
    %88 = vector.broadcast %87 : vector<8x1xf32> to vector<8x512xf32>
    %89 = arith.subf %83, %88 : vector<8x512xf32>
    %90 = arith.mulf %89, %89 : vector<8x512xf32>
    %cst_41 = arith.constant dense<0.000000e+00> : vector<8xf32>
    %91 = vector.multi_reduction <add>, %90, %cst_41 [1] : vector<8x512xf32> to vector<8xf32>
    %92 = vector.shape_cast %91 : vector<8xf32> to vector<8x1xf32>
    %cst_42 = arith.constant 0.00195694715 : f32
    %93 = vector.broadcast %cst_42 : f32 to vector<8x1xf32>
    %94 = arith.mulf %92, %93 : vector<8x1xf32>
    %cst_43 = arith.constant 9.99999974E-5 : f32
    %95 = vector.broadcast %cst_43 : f32 to vector<8x1xf32>
    %96 = arith.addf %94, %95 : vector<8x1xf32>
    %cst_44 = arith.constant 4.000000e+00 : f32
    %97 = vector.broadcast %cst_44 : f32 to vector<8x1xf32>
    %98 = arith.mulf %97, %96 : vector<8x1xf32>
    %cst_45 = arith.constant 1.000000e+00 : f32
    %99 = vector.broadcast %cst_45 : f32 to vector<8x1xf32>
    %100 = arith.divf %99, %98 : vector<8x1xf32>
    %101 = vector.broadcast %100 : vector<8x1xf32> to vector<8x512xf32>
    %102 = arith.mulf %90, %101 : vector<8x512xf32>
    %cst_46 = arith.constant 5.000000e-01 : f32
    %103 = vector.broadcast %cst_46 : f32 to vector<8x512xf32>
    %104 = arith.addf %102, %103 : vector<8x512xf32>
    %cst_47 = arith.constant 0.000000e+00 : f32
    %105 = vector.broadcast %cst_47 : f32 to vector<8x512xf32>
    %106 = arith.subf %105, %104 : vector<8x512xf32>
    %107 = math.exp %106 : vector<8x512xf32>
    %cst_48 = arith.constant 1.000000e+00 : f32
    %108 = vector.broadcast %cst_48 : f32 to vector<8x512xf32>
    %109 = arith.addf %108, %107 : vector<8x512xf32>
    %cst_49 = arith.constant 1.000000e+00 : f32
    %110 = vector.broadcast %cst_49 : f32 to vector<8x512xf32>
    %111 = arith.divf %110, %109 : vector<8x512xf32>
    %112 = arith.mulf %83, %111 : vector<8x512xf32>
    %c0_50 = arith.constant 0 : index
    %c0_51 = arith.constant 0 : index
    %113 = vector.load %arg8[%c0_50, %c0_51] : memref<8x512xf32, #tpu.memory_space<vmem>>, vector<8x512xf32>
    tpu.vector_store %arg8[%c0_50, %c0_51], %112 {strides = array<i32>} : memref<8x512xf32, #tpu.memory_space<vmem>>, vector<8x512xf32>,
    return
  }
}

</mosaic_0001>

<llo_original>
// kernel: forward.1
$region0: #{forward.1}
  #allocation0 [shape = 'u32[]', space=smem, size = 0x4, offset = 0x4, fixed_abs, tag = 'smem constant byte address 0x4 - core index']
  #allocation1 [shape = 'u32[144,128]{1,0:T(1,128)}', space=vmem, size = 0x12000, scoped, tag = 'internal scratch']
  %s0 = inlined_call_operand.vmem [shape: f32[8,512], index: 0, kind: input, shape index: {}]
  %s1 = inlined_call_operand.hbm [shape: bf16[512,512], index: 1, kind: input, shape index: {}]
  %s2 = inlined_call_operand.vmem [shape: f32[8,8], index: 2, kind: input, shape index: {}]
  %s3 = inlined_call_operand.vmem [shape: f32[8,1], index: 3, kind: input, shape index: {}]
  %s4 = inlined_call_operand.vmem [shape: f32[8,4], index: 4, kind: input, shape index: {}]
  %s5 = inlined_call_operand.vmem [shape: f32[4,8], index: 5, kind: input, shape index: {}]
  %s6 = inlined_call_operand.vmem [shape: f32[4,1], index: 6, kind: input, shape index: {}]
  %s7 = inlined_call_operand.vmem [shape: f32[4,1], index: 7, kind: input, shape index: {}]
  %s8 = inlined_call_operand.vmem [shape: f32[8,512], index: 8, kind: output, shape index: {}]
  %s9 = sld [smem:[#allocation0]]
  $region46: #{forward.1} parent=0
    _
  %s11 = ssub.s32 1, %s9
  %s12 = scalar_select 0, %s11, %s9
  $region1: #{forward.1} parent=0
    #allocation2 [shape = 'u8[524288]{0}', space=vmem, size = 0x80000, scoped, tag = 'input window, operand 1, single buffered']
    #allocation3 [shape = 's32[1]{0}', space=sflag, size = 0x4, scoped, tag = 'scoped memory for forward.1']
    %13 = vsyncpa [#allocation3], 0
    // Predicated region
    $region2: #{forward.1} parent=1 // pred_check
      _
    $region3: #{forward.1} parent=1 // pred_check_branch
      %15 = sbr.rel (0) target = $region5
    $region4: #{forward.1} parent=1 // pred_region
      _
    $region5: #{forward.1} parent=1 // pred_fallthru
      _
    // Predicated region
    $region6: #{forward.1} parent=1 // pred_check
      _
    $region7: #{forward.1} parent=1 // pred_check_branch
      %17 = sbr.rel (0) target = $region9
    $region8: #{forward.1} parent=1 // pred_region
      %s19 = ssub.s32 16384, 16384
      %20 = vsyncadd [#allocation3], %s19
      %s21 = sshll.u32 [#allocation2], 4
      %s22 = int_to_ptr.vmem [resolvable:$true] %s21
      %27 = dma.hbm_to_vmem [thread:$0]  %s1, 16384, %s22, [#allocation3], 256, 256, 16
    $region9: #{forward.1} parent=1 // pred_fallthru
      _
    // Predicated region
    $region10: #{forward.1} parent=1 // pred_check
      _
    $region11: #{forward.1} parent=1 // pred_check_branch
      %29 = sbr.rel (0) target = $region13
    $region12: #{forward.1} parent=1 // pred_region
      _
    $region13: #{forward.1} parent=1 // pred_fallthru
      _
    // Predicated region
    $region14: #{forward.1} parent=1 // pred_check
      _
    $region15: #{forward.1} parent=1 // pred_check_branch
      %31 = sbr.rel (0) target = $region17
    $region16: #{forward.1} parent=1 // pred_region
      _
    $region17: #{forward.1} parent=1 // pred_fallthru
      _
    // Predicated region
    $region18: #{forward.1} parent=1 // pred_check
      _
    $region19: #{forward.1} parent=1 // pred_check_branch
      %33 = sbr.rel (0) target = $region21
    $region20: #{forward.1} parent=1 // pred_region
      _
    $region21: #{forward.1} parent=1 // pred_fallthru
      _
    // Predicated region
    $region22: #{forward.1} parent=1 // pred_check
      _
    $region23: #{forward.1} parent=1 // pred_check_branch
      %35 = sbr.rel (0) target = $region25
    $region24: #{forward.1} parent=1 // pred_region
      _
    $region25: #{forward.1} parent=1 // pred_fallthru
      _
    // Predicated region
    $region26: #{forward.1} parent=1 // pred_check
      _
    $region27: #{forward.1} parent=1 // pred_check_branch
      %37 = sbr.rel (0) target = $region29
    $region28: #{forward.1} parent=1 // pred_region
      _
    $region29: #{forward.1} parent=1 // pred_fallthru
      _
    // Predicated region
    $region30: #{forward.1} parent=1 // pred_check
      _
    $region31: #{forward.1} parent=1 // pred_check_branch
      %39 = sbr.rel (0) target = $region33
    $region32: #{forward.1} parent=1 // pred_region
      _
    $region33: #{forward.1} parent=1 // pred_fallthru
      _
    // Predicated region
    $region34: #{forward.1} parent=1 // pred_check
      _
    $region35: #{forward.1} parent=1 // pred_check_branch
      %41 = sbr.rel (0) target = $region37
    $region36: #{forward.1} parent=1 // pred_region
      %42 = dma.done [#allocation3], 16384
    $region37: #{forward.1} parent=1 // pred_fallthru
      _
    %v43 = vld [vmem:[%s0] sm:$0xff]
    %v44 = vld [vmem:[%s0 + $0x8] sm:$0xff]
    %v45 = vld [vmem:[%s0 + $0x10] sm:$0xff]
    %v46 = vld [vmem:[%s0 + $0x18] sm:$0xff]
    %v47 = vadd.f32 %v43, %v44
    %v48 = vadd.f32 %v47, %v45
    %v49 = vadd.f32 %v48, %v46
    %50 = vadd.xlane.f32.xlu0 %v49
    %v51 = vpop.xlane.xlu0 %50
    %v52 = vmul.f32 %v51, 0.001953125
    %v53 = vsub.f32 %v43, %v52
    %v54 = vsub.f32 %v44, %v52
    %v55 = vsub.f32 %v45, %v52
    %v56 = vsub.f32 %v46, %v52
    %v57 = vmul.f32 %v53, %v53
    %v58 = vmul.f32 %v54, %v54
    %v59 = vmul.f32 %v55, %v55
    %v60 = vmul.f32 %v56, %v56
    %v61 = vadd.f32 %v57, %v58
    %v62 = vadd.f32 %v61, %v59
    %v63 = vadd.f32 %v62, %v60
    %64 = vadd.xlane.f32.xlu0 %v63
    %v65 = vpop.xlane.xlu0 %64
    %v66 = vmul.f32 %v65, 0.0019569471
    %v67 = vadd.f32 %v66, 0.0001
    %v68 = vmul.f32 %v67, 4.0
    %v69 = vrcp.pop %v68
    %v70 = vmul.f32 1.0, %v69
    %v71 = vmul.f32 %v57, %v70
    %v72 = vmul.f32 %v58, %v70
    %v73 = vmul.f32 %v59, %v70
    %v74 = vmul.f32 %v60, %v70
    %v75 = vadd.f32 %v71, 0.5
    %v76 = vadd.f32 %v72, 0.5
    %v77 = vadd.f32 %v73, 0.5
    %v78 = vadd.f32 %v74, 0.5
    %v79 = vsub.f32 0.0, %v75
    %v80 = vsub.f32 0.0, %v76
    %v81 = vsub.f32 0.0, %v77
    %v82 = vsub.f32 0.0, %v78
    %v83 = vmul.f32 %v79, 1.442695
    %v84 = vpow.pop %v83
    %v85 = vmul.f32 %v80, 1.442695
    %v86 = vpow.pop %v85
    %v87 = vmul.f32 %v81, 1.442695
    %v88 = vpow.pop %v87
    %v89 = vmul.f32 %v82, 1.442695
    %v90 = vpow.pop %v89
    %v91 = vadd.f32 %v84, 1.0
    %v92 = vadd.f32 %v86, 1.0
    %v93 = vadd.f32 %v88, 1.0
    %v94 = vadd.f32 %v90, 1.0
    %v95 = vrcp.pop %v91
    %v96 = vmul.f32 1.0, %v95
    %v97 = vrcp.pop %v92
    %v98 = vmul.f32 1.0, %v97
    %v99 = vrcp.pop %v93
    %v100 = vmul.f32 1.0, %v99
    %v101 = vrcp.pop %v94
    %v102 = vmul.f32 1.0, %v101
    %v103 = vmul.f32 %v43, %v96
    %v104 = vmul.f32 %v44, %v98
    %v105 = vmul.f32 %v45, %v100
    %v106 = vmul.f32 %v46, %v102
    %v107 = vld [vmem:[#allocation2] sm:$0xff]
    %v108 = vld [vmem:[#allocation2 + $0x8] sm:$0xff]
    %v109 = vld [vmem:[#allocation2 + $0x10] sm:$0xff]
    %v110 = vld [vmem:[#allocation2 + $0x18] sm:$0xff]
    %v111 = vld [vmem:[#allocation2 + $0x20] sm:$0xff]
    %v112 = vld [vmem:[#allocation2 + $0x28] sm:$0xff]
    %v113 = vld [vmem:[#allocation2 + $0x30] sm:$0xff]
    %v114 = vld [vmem:[#allocation2 + $0x38] sm:$0xff]
    %v115 = vld [vmem:[#allocation2 + $0x40] sm:$0xff]
    %v116 = vld [vmem:[#allocation2 + $0x48] sm:$0xff]
    %v117 = vld [vmem:[#allocation2 + $0x50] sm:$0xff]
    %v118 = vld [vmem:[#allocation2 + $0x58] sm:$0xff]
    %v119 = vld [vmem:[#allocation2 + $0x60] sm:$0xff]
    %v120 = vld [vmem:[#allocation2 + $0x68] sm:$0xff]
    %v121 = vld [vmem:[#allocation2 + $0x70] sm:$0xff]
    %v122 = vld [vmem:[#allocation2 + $0x78] sm:$0xff]
    %v123 = vld [vmem:[#allocation2 + $0x80] sm:$0xff]
    %v124 = vld [vmem:[#allocation2 + $0x88] sm:$0xff]
    %v125 = vld [vmem:[#allocation2 + $0x90] sm:$0xff]
    %v126 = vld [vmem:[#allocation2 + $0x98] sm:$0xff]
    %v127 = vld [vmem:[#allocation2 + $0xa0] sm:$0xff]
    %v128 = vld [vmem:[#allocation2 + $0xa8] sm:$0xff]
    %v129 = vld [vmem:[#allocation2 + $0xb0] sm:$0xff]
    %v130 = vld [vmem:[#allocation2 + $0xb8] sm:$0xff]
    %v131 = vld [vmem:[#allocation2 + $0xc0] sm:$0xff]
    %v132 = vld [vmem:[#allocation2 + $0xc8] sm:$0xff]
    %v133 = vld [vmem:[#allocation2 + $0xd0] sm:$0xff]
    %v134 = vld [vmem:[#allocation2 + $0xd8] sm:$0xff]
    %v135 = vld [vmem:[#allocation2 + $0xe0] sm:$0xff]
    %v136 = vld [vmem:[#allocation2 + $0xe8] sm:$0xff]
    %v137 = vld [vmem:[#allocation2 + $0xf0] sm:$0xff]
    %v138 = vld [vmem:[#allocation2 + $0xf8] sm:$0xff]
    %v139 = vld [vmem:[#allocation2 + $0x100] sm:$0xff]
    %v140 = vld [vmem:[#allocation2 + $0x108] sm:$0xff]
    %v141 = vld [vmem:[#allocation2 + $0x110] sm:$0xff]
    %v142 = vld [vmem:[#allocation2 + $0x118] sm:$0xff]
    %v143 = vld [vmem:[#allocation2 + $0x120] sm:$0xff]
    %v144 = vld [vmem:[#allocation2 + $0x128] sm:$0xff]
    %v145 = vld [vmem:[#allocation2 + $0x130] sm:$0xff]
    %v146 = vld [vmem:[#allocation2 + $0x138] sm:$0xff]
    %v147 = vld [vmem:[#allocation2 + $0x140] sm:$0xff]
    %v148 = vld [vmem:[#allocation2 + $0x148] sm:$0xff]
    %v149 = vld [vmem:[#allocation2 + $0x150] sm:$0xff]
    %v150 = vld [vmem:[#allocation2 + $0x158] sm:$0xff]
    %v151 = vld [vmem:[#allocation2 + $0x160] sm:$0xff]
    %v152 = vld [vmem:[#allocation2 + $0x168] sm:$0xff]
    %v153 = vld [vmem:[#allocation2 + $0x170] sm:$0xff]
    %v154 = vld [vmem:[#allocation2 + $0x178] sm:$0xff]
    %v155 = vld [vmem:[#allocation2 + $0x180] sm:$0xff]
    %v156 = vld [vmem:[#allocation2 + $0x188] sm:$0xff]
    %v157 = vld [vmem:[#allocation2 + $0x190] sm:$0xff]
    %v158 = vld [vmem:[#allocation2 + $0x198] sm:$0xff]
    %v159 = vld [vmem:[#allocation2 + $0x1a0] sm:$0xff]
    %v160 = vld [vmem:[#allocation2 + $0x1a8] sm:$0xff]
    %v161 = vld [vmem:[#allocation2 + $0x1b0] sm:$0xff]
    %v162 = vld [vmem:[#allocation2 + $0x1b8] sm:$0xff]
    %v163 = vld [vmem:[#allocation2 + $0x1c0] sm:$0xff]
    %v164 = vld [vmem:[#allocation2 + $0x1c8] sm:$0xff]
    %v165 = vld [vmem:[#allocation2 + $0x1d0] sm:$0xff]
    %v166 = vld [vmem:[#allocation2 + $0x1d8] sm:$0xff]
    %v167 = vld [vmem:[#allocation2 + $0x1e0] sm:$0xff]
    %v168 = vld [vmem:[#allocation2 + $0x1e8] sm:$0xff]
    %v169 = vld [vmem:[#allocation2 + $0x1f0] sm:$0xff]
    %v170 = vld [vmem:[#allocation2 + $0x1f8] sm:$0xff]
    %v171 = vld [vmem:[#allocation2 + $0x200] sm:$0xff]
    %v172 = vld [vmem:[#allocation2 + $0x208] sm:$0xff]
    %v173 = vld [vmem:[#allocation2 + $0x210] sm:$0xff]
    %v174 = vld [vmem:[#allocation2 + $0x218] sm:$0xff]
    %v175 = vld [vmem:[#allocation2 + $0x220] sm:$0xff]
    %v176 = vld [vmem:[#allocation2 + $0x228] sm:$0xff]
    %v177 = vld [vmem:[#allocation2 + $0x230] sm:$0xff]
    %v178 = vld [vmem:[#allocation2 + $0x238] sm:$0xff]
    %v179 = vld [vmem:[#allocation2 + $0x240] sm:$0xff]
    %v180 = vld [vmem:[#allocation2 + $0x248] sm:$0xff]
    %v181 = vld [vmem:[#allocation2 + $0x250] sm:$0xff]
    %v182 = vld [vmem:[#allocation2 + $0x258] sm:$0xff]
    %v183 = vld [vmem:[#allocation2 + $0x260] sm:$0xff]
    %v184 = vld [vmem:[#allocation2 + $0x268] sm:$0xff]
    %v185 = vld [vmem:[#allocation2 + $0x270] sm:$0xff]
    %v186 = vld [vmem:[#allocation2 + $0x278] sm:$0xff]
    %v187 = vld [vmem:[#allocation2 + $0x280] sm:$0xff]
    %v188 = vld [vmem:[#allocation2 + $0x288] sm:$0xff]
    %v189 = vld [vmem:[#allocation2 + $0x290] sm:$0xff]
    %v190 = vld [vmem:[#allocation2 + $0x298] sm:$0xff]
    %v191 = vld [vmem:[#allocation2 + $0x2a0] sm:$0xff]
    %v192 = vld [vmem:[#allocation2 + $0x2a8] sm:$0xff]
    %v193 = vld [vmem:[#allocation2 + $0x2b0] sm:$0xff]
    %v194 = vld [vmem:[#allocation2 + $0x2b8] sm:$0xff]
    %v195 = vld [vmem:[#allocation2 + $0x2c0] sm:$0xff]
    %v196 = vld [vmem:[#allocation2 + $0x2c8] sm:$0xff]
    %v197 = vld [vmem:[#allocation2 + $0x2d0] sm:$0xff]
    %v198 = vld [vmem:[#allocation2 + $0x2d8] sm:$0xff]
    %v199 = vld [vmem:[#allocation2 + $0x2e0] sm:$0xff]
    %v200 = vld [vmem:[#allocation2 + $0x2e8] sm:$0xff]
    %v201 = vld [vmem:[#allocation2 + $0x2f0] sm:$0xff]
    %v202 = vld [vmem:[#allocation2 + $0x2f8] sm:$0xff]
    %v203 = vld [vmem:[#allocation2 + $0x300] sm:$0xff]
    %v204 = vld [vmem:[#allocation2 + $0x308] sm:$0xff]
    %v205 = vld [vmem:[#allocation2 + $0x310] sm:$0xff]
    %v206 = vld [vmem:[#allocation2 + $0x318] sm:$0xff]
    %v207 = vld [vmem:[#allocation2 + $0x320] sm:$0xff]
    %v208 = vld [vmem:[#allocation2 + $0x328] sm:$0xff]
    %v209 = vld [vmem:[#allocation2 + $0x330] sm:$0xff]
    %v210 = vld [vmem:[#allocation2 + $0x338] sm:$0xff]
    %v211 = vld [vmem:[#allocation2 + $0x340] sm:$0xff]
    %v212 = vld [vmem:[#allocation2 + $0x348] sm:$0xff]
    %v213 = vld [vmem:[#allocation2 + $0x350] sm:$0xff]
    %v214 = vld [vmem:[#allocation2 + $0x358] sm:$0xff]
    %v215 = vld [vmem:[#allocation2 + $0x360] sm:$0xff]
    %v216 = vld [vmem:[#allocation2 + $0x368] sm:$0xff]
    %v217 = vld [vmem:[#allocation2 + $0x370] sm:$0xff]
    %v218 = vld [vmem:[#allocation2 + $0x378] sm:$0xff]
    %v219 = vld [vmem:[#allocation2 + $0x380] sm:$0xff]
    %v220 = vld [vmem:[#allocation2 + $0x388] sm:$0xff]
    %v221 = vld [vmem:[#allocation2 + $0x390] sm:$0xff]
    %v222 = vld [vmem:[#allocation2 + $0x398] sm:$0xff]
    %v223 = vld [vmem:[#allocation2 + $0x3a0] sm:$0xff]
    %v224 = vld [vmem:[#allocation2 + $0x3a8] sm:$0xff]
    %v225 = vld [vmem:[#allocation2 + $0x3b0] sm:$0xff]
    %v226 = vld [vmem:[#allocation2 + $0x3b8] sm:$0xff]
    %v227 = vld [vmem:[#allocation2 + $0x3c0] sm:$0xff]
    %v228 = vld [vmem:[#allocation2 + $0x3c8] sm:$0xff]
    %v229 = vld [vmem:[#allocation2 + $0x3d0] sm:$0xff]
    %v230 = vld [vmem:[#allocation2 + $0x3d8] sm:$0xff]
    %v231 = vld [vmem:[#allocation2 + $0x3e0] sm:$0xff]
    %v232 = vld [vmem:[#allocation2 + $0x3e8] sm:$0xff]
    %v233 = vld [vmem:[#allocation2 + $0x3f0] sm:$0xff]
    %v234 = vld [vmem:[#allocation2 + $0x3f8] sm:$0xff]
    %v363 = vunpack.c.l.b16 %v107
    %v364 = vunpack.c.h.b16 %v107
    %v365 = vunpack.c.l.b16 %v108
    %v366 = vunpack.c.h.b16 %v108
    %v367 = vunpack.c.l.b16 %v109
    %v368 = vunpack.c.h.b16 %v109
    %v369 = vunpack.c.l.b16 %v110
    %v370 = vunpack.c.h.b16 %v110
    %v371 = vunpack.c.l.b16 %v111
    %v372 = vunpack.c.h.b16 %v111
    %v373 = vunpack.c.l.b16 %v112
    %v374 = vunpack.c.h.b16 %v112
    %v375 = vunpack.c.l.b16 %v113
    %v376 = vunpack.c.h.b16 %v113
    %v377 = vunpack.c.l.b16 %v114
    %v378 = vunpack.c.h.b16 %v114
    %v379 = vunpack.c.l.b16 %v115
    %v380 = vunpack.c.h.b16 %v115
    %v381 = vunpack.c.l.b16 %v116
    %v382 = vunpack.c.h.b16 %v116
    %v383 = vunpack.c.l.b16 %v117
    %v384 = vunpack.c.h.b16 %v117
    %v385 = vunpack.c.l.b16 %v118
    %v386 = vunpack.c.h.b16 %v118
    %v387 = vunpack.c.l.b16 %v119
    %v388 = vunpack.c.h.b16 %v119
    %v389 = vunpack.c.l.b16 %v120
    %v390 = vunpack.c.h.b16 %v120
    %v391 = vunpack.c.l.b16 %v121
    %v392 = vunpack.c.h.b16 %v121
    %v393 = vunpack.c.l.b16 %v122
    %v394 = vunpack.c.h.b16 %v122
    %v395 = vunpack.c.l.b16 %v123
    %v396 = vunpack.c.h.b16 %v123
    %v397 = vunpack.c.l.b16 %v124
    %v398 = vunpack.c.h.b16 %v124
    %v399 = vunpack.c.l.b16 %v125
    %v400 = vunpack.c.h.b16 %v125
    %v401 = vunpack.c.l.b16 %v126
    %v402 = vunpack.c.h.b16 %v126
    %v403 = vunpack.c.l.b16 %v127
    %v404 = vunpack.c.h.b16 %v127
    %v405 = vunpack.c.l.b16 %v128
    %v406 = vunpack.c.h.b16 %v128
    %v407 = vunpack.c.l.b16 %v129
    %v408 = vunpack.c.h.b16 %v129
    %v409 = vunpack.c.l.b16 %v130
    %v410 = vunpack.c.h.b16 %v130
    %v411 = vunpack.c.l.b16 %v131
    %v412 = vunpack.c.h.b16 %v131
    %v413 = vunpack.c.l.b16 %v132
    %v414 = vunpack.c.h.b16 %v132
    %v415 = vunpack.c.l.b16 %v133
    %v416 = vunpack.c.h.b16 %v133
    %v417 = vunpack.c.l.b16 %v134
    %v418 = vunpack.c.h.b16 %v134
    %v419 = vunpack.c.l.b16 %v135
    %v420 = vunpack.c.h.b16 %v135
    %v421 = vunpack.c.l.b16 %v136
    %v422 = vunpack.c.h.b16 %v136
    %v423 = vunpack.c.l.b16 %v137
    %v424 = vunpack.c.h.b16 %v137
    %v425 = vunpack.c.l.b16 %v138
    %v426 = vunpack.c.h.b16 %v138
    %v427 = vunpack.c.l.b16 %v139
    %v428 = vunpack.c.h.b16 %v139
    %v429 = vunpack.c.l.b16 %v140
    %v430 = vunpack.c.h.b16 %v140
    %v431 = vunpack.c.l.b16 %v141
    %v432 = vunpack.c.h.b16 %v141
    %v433 = vunpack.c.l.b16 %v142
    %v434 = vunpack.c.h.b16 %v142
    %v435 = vunpack.c.l.b16 %v143
    %v436 = vunpack.c.h.b16 %v143
    %v437 = vunpack.c.l.b16 %v144
    %v438 = vunpack.c.h.b16 %v144
    %v439 = vunpack.c.l.b16 %v145
    %v440 = vunpack.c.h.b16 %v145
    %v441 = vunpack.c.l.b16 %v146
    %v442 = vunpack.c.h.b16 %v146
    %v443 = vunpack.c.l.b16 %v147
    %v444 = vunpack.c.h.b16 %v147
    %v445 = vunpack.c.l.b16 %v148
    %v446 = vunpack.c.h.b16 %v148
    %v447 = vunpack.c.l.b16 %v149
    %v448 = vunpack.c.h.b16 %v149
    %v449 = vunpack.c.l.b16 %v150
    %v450 = vunpack.c.h.b16 %v150
    %v451 = vunpack.c.l.b16 %v151
    %v452 = vunpack.c.h.b16 %v151
    %v453 = vunpack.c.l.b16 %v152
    %v454 = vunpack.c.h.b16 %v152
    %v455 = vunpack.c.l.b16 %v153
    %v456 = vunpack.c.h.b16 %v153
    %v457 = vunpack.c.l.b16 %v154
    %v458 = vunpack.c.h.b16 %v154
    %v459 = vunpack.c.l.b16 %v155
    %v460 = vunpack.c.h.b16 %v155
    %v461 = vunpack.c.l.b16 %v156
    %v462 = vunpack.c.h.b16 %v156
    %v463 = vunpack.c.l.b16 %v157
    %v464 = vunpack.c.h.b16 %v157
    %v465 = vunpack.c.l.b16 %v158
    %v466 = vunpack.c.h.b16 %v158
    %v467 = vunpack.c.l.b16 %v159
    %v468 = vunpack.c.h.b16 %v159
    %v469 = vunpack.c.l.b16 %v160
    %v470 = vunpack.c.h.b16 %v160
    %v471 = vunpack.c.l.b16 %v161
    %v472 = vunpack.c.h.b16 %v161
    %v473 = vunpack.c.l.b16 %v162
    %v474 = vunpack.c.h.b16 %v162
    %v475 = vunpack.c.l.b16 %v163
    %v476 = vunpack.c.h.b16 %v163
    %v477 = vunpack.c.l.b16 %v164
    %v478 = vunpack.c.h.b16 %v164
    %v479 = vunpack.c.l.b16 %v165
    %v480 = vunpack.c.h.b16 %v165
    %v481 = vunpack.c.l.b16 %v166
    %v482 = vunpack.c.h.b16 %v166
    %v483 = vunpack.c.l.b16 %v167
    %v484 = vunpack.c.h.b16 %v167
    %v485 = vunpack.c.l.b16 %v168
    %v486 = vunpack.c.h.b16 %v168
    %v487 = vunpack.c.l.b16 %v169
    %v488 = vunpack.c.h.b16 %v169
    %v489 = vunpack.c.l.b16 %v170
    %v490 = vunpack.c.h.b16 %v170
    %v491 = vunpack.c.l.b16 %v171
    %v492 = vunpack.c.h.b16 %v171
    %v493 = vunpack.c.l.b16 %v172
    %v494 = vunpack.c.h.b16 %v172
    %v495 = vunpack.c.l.b16 %v173
    %v496 = vunpack.c.h.b16 %v173
    %v497 = vunpack.c.l.b16 %v174
    %v498 = vunpack.c.h.b16 %v174
    %v499 = vunpack.c.l.b16 %v175
    %v500 = vunpack.c.h.b16 %v175
    %v501 = vunpack.c.l.b16 %v176
    %v502 = vunpack.c.h.b16 %v176
    %v503 = vunpack.c.l.b16 %v177
    %v504 = vunpack.c.h.b16 %v177
    %v505 = vunpack.c.l.b16 %v178
    %v506 = vunpack.c.h.b16 %v178
    %v507 = vunpack.c.l.b16 %v179
    %v508 = vunpack.c.h.b16 %v179
    %v509 = vunpack.c.l.b16 %v180
    %v510 = vunpack.c.h.b16 %v180
    %v511 = vunpack.c.l.b16 %v181
    %v512 = vunpack.c.h.b16 %v181
    %v513 = vunpack.c.l.b16 %v182
    %v514 = vunpack.c.h.b16 %v182
    %v515 = vunpack.c.l.b16 %v183
    %v516 = vunpack.c.h.b16 %v183
    %v517 = vunpack.c.l.b16 %v184
    %v518 = vunpack.c.h.b16 %v184
    %v519 = vunpack.c.l.b16 %v185
    %v520 = vunpack.c.h.b16 %v185
    %v521 = vunpack.c.l.b16 %v186
    %v522 = vunpack.c.h.b16 %v186
    %v523 = vunpack.c.l.b16 %v187
    %v524 = vunpack.c.h.b16 %v187
    %v525 = vunpack.c.l.b16 %v188
    %v526 = vunpack.c.h.b16 %v188
    %v527 = vunpack.c.l.b16 %v189
    %v528 = vunpack.c.h.b16 %v189
    %v529 = vunpack.c.l.b16 %v190
    %v530 = vunpack.c.h.b16 %v190
    %v531 = vunpack.c.l.b16 %v191
    %v532 = vunpack.c.h.b16 %v191
    %v533 = vunpack.c.l.b16 %v192
    %v534 = vunpack.c.h.b16 %v192
    %v535 = vunpack.c.l.b16 %v193
    %v536 = vunpack.c.h.b16 %v193
    %v537 = vunpack.c.l.b16 %v194
    %v538 = vunpack.c.h.b16 %v194
    %v539 = vunpack.c.l.b16 %v195
    %v540 = vunpack.c.h.b16 %v195
    %v541 = vunpack.c.l.b16 %v196
    %v542 = vunpack.c.h.b16 %v196
    %v543 = vunpack.c.l.b16 %v197
    %v544 = vunpack.c.h.b16 %v197
    %v545 = vunpack.c.l.b16 %v198
    %v546 = vunpack.c.h.b16 %v198
    %v547 = vunpack.c.l.b16 %v199
    %v548 = vunpack.c.h.b16 %v199
    %v549 = vunpack.c.l.b16 %v200
    %v550 = vunpack.c.h.b16 %v200
    %v551 = vunpack.c.l.b16 %v201
    %v552 = vunpack.c.h.b16 %v201
    %v553 = vunpack.c.l.b16 %v202
    %v554 = vunpack.c.h.b16 %v202
    %v555 = vunpack.c.l.b16 %v203
    %v556 = vunpack.c.h.b16 %v203
    %v557 = vunpack.c.l.b16 %v204
    %v558 = vunpack.c.h.b16 %v204
    %v559 = vunpack.c.l.b16 %v205
    %v560 = vunpack.c.h.b16 %v205
    %v561 = vunpack.c.l.b16 %v206
    %v562 = vunpack.c.h.b16 %v206
    %v563 = vunpack.c.l.b16 %v207
    %v564 = vunpack.c.h.b16 %v207
    %v565 = vunpack.c.l.b16 %v208
    %v566 = vunpack.c.h.b16 %v208
    %v567 = vunpack.c.l.b16 %v209
    %v568 = vunpack.c.h.b16 %v209
    %v569 = vunpack.c.l.b16 %v210
    %v570 = vunpack.c.h.b16 %v210
    %v571 = vunpack.c.l.b16 %v211
    %v572 = vunpack.c.h.b16 %v211
    %v573 = vunpack.c.l.b16 %v212
    %v574 = vunpack.c.h.b16 %v212
    %v575 = vunpack.c.l.b16 %v213
    %v576 = vunpack.c.h.b16 %v213
    %v577 = vunpack.c.l.b16 %v214
    %v578 = vunpack.c.h.b16 %v214
    %v579 = vunpack.c.l.b16 %v215
    %v580 = vunpack.c.h.b16 %v215
    %v581 = vunpack.c.l.b16 %v216
    %v582 = vunpack.c.h.b16 %v216
    %v583 = vunpack.c.l.b16 %v217
    %v584 = vunpack.c.h.b16 %v217
    %v585 = vunpack.c.l.b16 %v218
    %v586 = vunpack.c.h.b16 %v218
    %v587 = vunpack.c.l.b16 %v219
    %v588 = vunpack.c.h.b16 %v219
    %v589 = vunpack.c.l.b16 %v220
    %v590 = vunpack.c.h.b16 %v220
    %v591 = vunpack.c.l.b16 %v221
    %v592 = vunpack.c.h.b16 %v221
    %v593 = vunpack.c.l.b16 %v222
    %v594 = vunpack.c.h.b16 %v222
    %v595 = vunpack.c.l.b16 %v223
    %v596 = vunpack.c.h.b16 %v223
    %v597 = vunpack.c.l.b16 %v224
    %v598 = vunpack.c.h.b16 %v224
    %v599 = vunpack.c.l.b16 %v225
    %v600 = vunpack.c.h.b16 %v225
    %v601 = vunpack.c.l.b16 %v226
    %v602 = vunpack.c.h.b16 %v226
    %v603 = vunpack.c.l.b16 %v227
    %v604 = vunpack.c.h.b16 %v227
    %v605 = vunpack.c.l.b16 %v228
    %v606 = vunpack.c.h.b16 %v228
    %v607 = vunpack.c.l.b16 %v229
    %v608 = vunpack.c.h.b16 %v229
    %v609 = vunpack.c.l.b16 %v230
    %v610 = vunpack.c.h.b16 %v230
    %v611 = vunpack.c.l.b16 %v231
    %v612 = vunpack.c.h.b16 %v231
    %v613 = vunpack.c.l.b16 %v232
    %v614 = vunpack.c.h.b16 %v232
    %v615 = vunpack.c.l.b16 %v233
    %v616 = vunpack.c.h.b16 %v233
    %v617 = vunpack.c.l.b16 %v234
    %v618 = vunpack.c.h.b16 %v234
    %v619 = vpack.c.b16 %v367, %v363
    %v620 = vpack.c.b16 %v368, %v364
    %v621 = vpack.c.b16 %v369, %v365
    %v622 = vpack.c.b16 %v370, %v366
    %v623 = vpack.c.b16 %v375, %v371
    %v624 = vpack.c.b16 %v376, %v372
    %v625 = vpack.c.b16 %v377, %v373
    %v626 = vpack.c.b16 %v378, %v374
    %v627 = vpack.c.b16 %v383, %v379
    %v628 = vpack.c.b16 %v384, %v380
    %v629 = vpack.c.b16 %v385, %v381
    %v630 = vpack.c.b16 %v386, %v382
    %v631 = vpack.c.b16 %v391, %v387
    %v632 = vpack.c.b16 %v392, %v388
    %v633 = vpack.c.b16 %v393, %v389
    %v634 = vpack.c.b16 %v394, %v390
    %v635 = vpack.c.b16 %v399, %v395
    %v636 = vpack.c.b16 %v400, %v396
    %v637 = vpack.c.b16 %v401, %v397
    %v638 = vpack.c.b16 %v402, %v398
    %v639 = vpack.c.b16 %v407, %v403
    %v640 = vpack.c.b16 %v408, %v404
    %v641 = vpack.c.b16 %v409, %v405
    %v642 = vpack.c.b16 %v410, %v406
    %v643 = vpack.c.b16 %v415, %v411
    %v644 = vpack.c.b16 %v416, %v412
    %v645 = vpack.c.b16 %v417, %v413
    %v646 = vpack.c.b16 %v418, %v414
    %v647 = vpack.c.b16 %v423, %v419
    %v648 = vpack.c.b16 %v424, %v420
    %v649 = vpack.c.b16 %v425, %v421
    %v650 = vpack.c.b16 %v426, %v422
    %v651 = vpack.c.b16 %v431, %v427
    %v652 = vpack.c.b16 %v432, %v428
    %v653 = vpack.c.b16 %v433, %v429
    %v654 = vpack.c.b16 %v434, %v430
    %v655 = vpack.c.b16 %v439, %v435
    %v656 = vpack.c.b16 %v440, %v436
    %v657 = vpack.c.b16 %v441, %v437
    %v658 = vpack.c.b16 %v442, %v438
    %v659 = vpack.c.b16 %v447, %v443
    %v660 = vpack.c.b16 %v448, %v444
    %v661 = vpack.c.b16 %v449, %v445
    %v662 = vpack.c.b16 %v450, %v446
    %v663 = vpack.c.b16 %v455, %v451
    %v664 = vpack.c.b16 %v456, %v452
    %v665 = vpack.c.b16 %v457, %v453
    %v666 = vpack.c.b16 %v458, %v454
    %v667 = vpack.c.b16 %v463, %v459
    %v668 = vpack.c.b16 %v464, %v460
    %v669 = vpack.c.b16 %v465, %v461
    %v670 = vpack.c.b16 %v466, %v462
    %v671 = vpack.c.b16 %v471, %v467
    %v672 = vpack.c.b16 %v472, %v468
    %v673 = vpack.c.b16 %v473, %v469
    %v674 = vpack.c.b16 %v474, %v470
    %v675 = vpack.c.b16 %v479, %v475
    %v676 = vpack.c.b16 %v480, %v476
    %v677 = vpack.c.b16 %v481, %v477
    %v678 = vpack.c.b16 %v482, %v478
    %v679 = vpack.c.b16 %v487, %v483
    %v680 = vpack.c.b16 %v488, %v484
    %v681 = vpack.c.b16 %v489, %v485
    %v682 = vpack.c.b16 %v490, %v486
    %v683 = vpack.c.b16 %v495, %v491
    %v684 = vpack.c.b16 %v496, %v492
    %v685 = vpack.c.b16 %v497, %v493
    %v686 = vpack.c.b16 %v498, %v494
    %v687 = vpack.c.b16 %v503, %v499
    %v688 = vpack.c.b16 %v504, %v500
    %v689 = vpack.c.b16 %v505, %v501
    %v690 = vpack.c.b16 %v506, %v502
    %v691 = vpack.c.b16 %v511, %v507
    %v692 = vpack.c.b16 %v512, %v508
    %v693 = vpack.c.b16 %v513, %v509
    %v694 = vpack.c.b16 %v514, %v510
    %v695 = vpack.c.b16 %v519, %v515
    %v696 = vpack.c.b16 %v520, %v516
    %v697 = vpack.c.b16 %v521, %v517
    %v698 = vpack.c.b16 %v522, %v518
    %v699 = vpack.c.b16 %v527, %v523
    %v700 = vpack.c.b16 %v528, %v524
    %v701 = vpack.c.b16 %v529, %v525
    %v702 = vpack.c.b16 %v530, %v526
    %v703 = vpack.c.b16 %v535, %v531
    %v704 = vpack.c.b16 %v536, %v532
    %v705 = vpack.c.b16 %v537, %v533
    %v706 = vpack.c.b16 %v538, %v534
    %v707 = vpack.c.b16 %v543, %v539
    %v708 = vpack.c.b16 %v544, %v540
    %v709 = vpack.c.b16 %v545, %v541
    %v710 = vpack.c.b16 %v546, %v542
    %v711 = vpack.c.b16 %v551, %v547
    %v712 = vpack.c.b16 %v552, %v548
    %v713 = vpack.c.b16 %v553, %v549
    %v714 = vpack.c.b16 %v554, %v550
    %v715 = vpack.c.b16 %v559, %v555
    %v716 = vpack.c.b16 %v560, %v556
    %v717 = vpack.c.b16 %v561, %v557
    %v718 = vpack.c.b16 %v562, %v558
    %v719 = vpack.c.b16 %v567, %v563
    %v720 = vpack.c.b16 %v568, %v564
    %v721 = vpack.c.b16 %v569, %v565
    %v722 = vpack.c.b16 %v570, %v566
    %v723 = vpack.c.b16 %v575, %v571
    %v724 = vpack.c.b16 %v576, %v572
    %v725 = vpack.c.b16 %v577, %v573
    %v726 = vpack.c.b16 %v578, %v574
    %v727 = vpack.c.b16 %v583, %v579
    %v728 = vpack.c.b16 %v584, %v580
    %v729 = vpack.c.b16 %v585, %v581
    %v730 = vpack.c.b16 %v586, %v582
    %v731 = vpack.c.b16 %v591, %v587
    %v732 = vpack.c.b16 %v592, %v588
    %v733 = vpack.c.b16 %v593, %v589
    %v734 = vpack.c.b16 %v594, %v590
    %v735 = vpack.c.b16 %v599, %v595
    %v736 = vpack.c.b16 %v600, %v596
    %v737 = vpack.c.b16 %v601, %v597
    %v738 = vpack.c.b16 %v602, %v598
    %v739 = vpack.c.b16 %v607, %v603
    %v740 = vpack.c.b16 %v608, %v604
    %v741 = vpack.c.b16 %v609, %v605
    %v742 = vpack.c.b16 %v610, %v606
    %v743 = vpack.c.b16 %v615, %v611
    %v744 = vpack.c.b16 %v616, %v612
    %v745 = vpack.c.b16 %v617, %v613
    %v746 = vpack.c.b16 %v618, %v614
    %875 = vmatprep.subr.bf16.mxu0 %v648
    %876 = vmatpush1.bf16.msra.mxu0 %v647
    %877 = vmatprep.subr.bf16.mxu0 %v644
    %878 = vmatpush1.bf16.msra.mxu0 %v643
    %879 = vmatprep.subr.bf16.mxu0 %v640
    %880 = vmatpush1.bf16.msra.mxu0 %v639
    %881 = vmatprep.subr.bf16.mxu0 %v636
    %882 = vmatpush1.bf16.msra.mxu0 %v635
    %883 = vmatprep.subr.bf16.mxu0 %v632
    %884 = vmatpush1.bf16.msra.mxu0 %v631
    %885 = vmatprep.subr.bf16.mxu0 %v628
    %886 = vmatpush1.bf16.msra.mxu0 %v627
    %887 = vmatprep.subr.bf16.mxu0 %v624
    %888 = vmatpush1.bf16.msra.mxu0 %v623
    %889 = vmatprep.subr.bf16.mxu0 %v620
    %890 = vmatpush1.bf16.msra.mxu0 %v619
    %891 = vmatprep.subr.bf16.mxu0 %v680
    %892 = vmatpush2.bf16.msra.mxu0 %v679
    %893 = vmatprep.subr.bf16.mxu0 %v676
    %894 = vmatpush2.bf16.msra.mxu0 %v675
    %895 = vmatprep.subr.bf16.mxu0 %v672
    %896 = vmatpush2.bf16.msra.mxu0 %v671
    %897 = vmatprep.subr.bf16.mxu0 %v668
    %898 = vmatpush2.bf16.msra.mxu0 %v667
    %899 = vmatprep.subr.bf16.mxu0 %v664
    %900 = vmatpush2.bf16.msra.mxu0 %v663
    %901 = vmatprep.subr.bf16.mxu0 %v660
    %902 = vmatpush2.bf16.msra.mxu0 %v659
    %903 = vmatprep.subr.bf16.mxu0 %v656
    %904 = vmatpush2.bf16.msra.mxu0 %v655
    %905 = vmatprep.subr.bf16.mxu0 %v652
    %906 = vmatpush2.bf16.msra.mxu0 %v651
    %907 = vmatprep.mubr.f32.mxu0 %v104
    %908 = vmatmul.mubr.f32.gmra.mxu0 %v103
    %v909 = vpop.f32.mrf.mxu0
    %v910 = vadd.f32 0.0, %v909
    %v911 = vpop.f32.mrf.mxu0
    %v912 = vadd.f32 0.0, %v911
    %913 = vdwg.mxu0
    %914 = vmatprep.subr.bf16.mxu0 %v712
    %915 = vmatpush1.bf16.msra.mxu0 %v711
    %916 = vmatprep.subr.bf16.mxu0 %v708
    %917 = vmatpush1.bf16.msra.mxu0 %v707
    %918 = vmatprep.subr.bf16.mxu0 %v704
    %919 = vmatpush1.bf16.msra.mxu0 %v703
    %920 = vmatprep.subr.bf16.mxu0 %v700
    %921 = vmatpush1.bf16.msra.mxu0 %v699
    %922 = vmatprep.subr.bf16.mxu0 %v696
    %923 = vmatpush1.bf16.msra.mxu0 %v695
    %924 = vmatprep.subr.bf16.mxu0 %v692
    %925 = vmatpush1.bf16.msra.mxu0 %v691
    %926 = vmatprep.subr.bf16.mxu0 %v688
    %927 = vmatpush1.bf16.msra.mxu0 %v687
    %928 = vmatprep.subr.bf16.mxu0 %v684
    %929 = vmatpush1.bf16.msra.mxu0 %v683
    %930 = vmatprep.subr.bf16.mxu0 %v744
    %931 = vmatpush2.bf16.msra.mxu0 %v743
    %932 = vmatprep.subr.bf16.mxu0 %v740
    %933 = vmatpush2.bf16.msra.mxu0 %v739
    %934 = vmatprep.subr.bf16.mxu0 %v736
    %935 = vmatpush2.bf16.msra.mxu0 %v735
    %936 = vmatprep.subr.bf16.mxu0 %v732
    %937 = vmatpush2.bf16.msra.mxu0 %v731
    %938 = vmatprep.subr.bf16.mxu0 %v728
    %939 = vmatpush2.bf16.msra.mxu0 %v727
    %940 = vmatprep.subr.bf16.mxu0 %v724
    %941 = vmatpush2.bf16.msra.mxu0 %v723
    %942 = vmatprep.subr.bf16.mxu0 %v720
    %943 = vmatpush2.bf16.msra.mxu0 %v719
    %944 = vmatprep.subr.bf16.mxu0 %v716
    %945 = vmatpush2.bf16.msra.mxu0 %v715
    %946 = vmatprep.mubr.f32.mxu0 %v106
    %947 = vmatmul.mubr.f32.gmra.mxu0 %v105
    %v948 = vpop.f32.mrf.mxu0
    %v949 = vadd.f32 %v910, %v948
    %v950 = vpop.f32.mrf.mxu0
    %v951 = vadd.f32 %v912, %v950
    %952 = vdwg.mxu0
    %953 = vmatprep.subr.bf16.mxu0 %v650
    %954 = vmatpush1.bf16.msra.mxu0 %v649
    %955 = vmatprep.subr.bf16.mxu0 %v646
    %956 = vmatpush1.bf16.msra.mxu0 %v645
    %957 = vmatprep.subr.bf16.mxu0 %v642
    %958 = vmatpush1.bf16.msra.mxu0 %v641
    %959 = vmatprep.subr.bf16.mxu0 %v638
    %960 = vmatpush1.bf16.msra.mxu0 %v637
    %961 = vmatprep.subr.bf16.mxu0 %v634
    %962 = vmatpush1.bf16.msra.mxu0 %v633
    %963 = vmatprep.subr.bf16.mxu0 %v630
    %964 = vmatpush1.bf16.msra.mxu0 %v629
    %965 = vmatprep.subr.bf16.mxu0 %v626
    %966 = vmatpush1.bf16.msra.mxu0 %v625
    %967 = vmatprep.subr.bf16.mxu0 %v622
    %968 = vmatpush1.bf16.msra.mxu0 %v621
    %969 = vmatprep.subr.bf16.mxu0 %v682
    %970 = vmatpush2.bf16.msra.mxu0 %v681
    %971 = vmatprep.subr.bf16.mxu0 %v678
    %972 = vmatpush2.bf16.msra.mxu0 %v677
    %973 = vmatprep.subr.bf16.mxu0 %v674
    %974 = vmatpush2.bf16.msra.mxu0 %v673
    %975 = vmatprep.subr.bf16.mxu0 %v670
    %976 = vmatpush2.bf16.msra.mxu0 %v669
    %977 = vmatprep.subr.bf16.mxu0 %v666
    %978 = vmatpush2.bf16.msra.mxu0 %v665
    %979 = vmatprep.subr.bf16.mxu0 %v662
    %980 = vmatpush2.bf16.msra.mxu0 %v661
    %981 = vmatprep.subr.bf16.mxu0 %v658
    %982 = vmatpush2.bf16.msra.mxu0 %v657
    %983 = vmatprep.subr.bf16.mxu0 %v654
    %984 = vmatpush2.bf16.msra.mxu0 %v653
    %985 = vmatprep.mubr.f32.mxu0 %v104
    %986 = vmatmul.mubr.f32.gmra.mxu0 %v103
    %v987 = vpop.f32.mrf.mxu0
    %v988 = vadd.f32 0.0, %v987
    %v989 = vpop.f32.mrf.mxu0
    %v990 = vadd.f32 0.0, %v989
    %991 = vdwg.mxu0
    %992 = vmatprep.subr.bf16.mxu0 %v714
    %993 = vmatpush1.bf16.msra.mxu0 %v713
    %994 = vmatprep.subr.bf16.mxu0 %v710
    %995 = vmatpush1.bf16.msra.mxu0 %v709
    %996 = vmatprep.subr.bf16.mxu0 %v706
    %997 = vmatpush1.bf16.msra.mxu0 %v705
    %998 = vmatprep.subr.bf16.mxu0 %v702
    %999 = vmatpush1.bf16.msra.mxu0 %v701
    %1000 = vmatprep.subr.bf16.mxu0 %v698
    %1001 = vmatpush1.bf16.msra.mxu0 %v697
    %1002 = vmatprep.subr.bf16.mxu0 %v694
    %1003 = vmatpush1.bf16.msra.mxu0 %v693
    %1004 = vmatprep.subr.bf16.mxu0 %v690
    %1005 = vmatpush1.bf16.msra.mxu0 %v689
    %1006 = vmatprep.subr.bf16.mxu0 %v686
    %1007 = vmatpush1.bf16.msra.mxu0 %v685
    %1008 = vmatprep.subr.bf16.mxu0 %v746
    %1009 = vmatpush2.bf16.msra.mxu0 %v745
    %1010 = vmatprep.subr.bf16.mxu0 %v742
    %1011 = vmatpush2.bf16.msra.mxu0 %v741
    %1012 = vmatprep.subr.bf16.mxu0 %v738
    %1013 = vmatpush2.bf16.msra.mxu0 %v737
    %1014 = vmatprep.subr.bf16.mxu0 %v734
    %1015 = vmatpush2.bf16.msra.mxu0 %v733
    %1016 = vmatprep.subr.bf16.mxu0 %v730
    %1017 = vmatpush2.bf16.msra.mxu0 %v729
    %1018 = vmatprep.subr.bf16.mxu0 %v726
    %1019 = vmatpush2.bf16.msra.mxu0 %v725
    %1020 = vmatprep.subr.bf16.mxu0 %v722
    %1021 = vmatpush2.bf16.msra.mxu0 %v721
    %1022 = vmatprep.subr.bf16.mxu0 %v718
    %1023 = vmatpush2.bf16.msra.mxu0 %v717
    %1024 = vmatprep.mubr.f32.mxu0 %v106
    %1025 = vmatmul.mubr.f32.gmra.mxu0 %v105
    %v1026 = vpop.f32.mrf.mxu0
    %v1027 = vadd.f32 %v988, %v1026
    %v1028 = vpop.f32.mrf.mxu0
    %v1029 = vadd.f32 %v990, %v1028
    %1030 = vdwg.mxu0
    %v1031 = vmul.f32 %v949, 0.037037037
    %v1032 = vmul.f32 %v951, 0.037037037
    %v1033 = vmul.f32 %v1027, 0.037037037
    %v1034 = vmul.f32 %v1029, 0.037037037
    %v1035 = vsub.f32 %v103, %v1031
    %v1036 = vsub.f32 %v104, %v1032
    %v1037 = vsub.f32 %v105, %v1033
    %v1038 = vsub.f32 %v106, %v1034
    %v1039 = vld [vmem:[%s2] sm:$0xff]
    %v1040 = vld [vmem:[%s3] sm:$0xff]
    %1042 = vset.pattern.permute.xlu0 0
    %1043 = vperm.xlu0 %1042, %v1040
    %v1044 = vpop.permute.xlu0 %1043
    %vm1046 = vcmask 64512
    %v1048 = vsel %vm1046, %v1039, 0
    %1050 = vmatprep.subr.mxu0 0.0
    %1051 = vmatpush1.msra.mxu0 0.0
    %1052 = vmatprep.subr.mxu0 0.0
    %1053 = vmatpush1.msra.mxu0 0.0
    %1054 = vmatprep.subr.mxu0 0.0
    %1055 = vmatpush1.msra.mxu0 0.0
    %1056 = vmatprep.subr.mxu0 0.0
    %1057 = vmatpush1.msra.mxu0 0.0
    %1058 = vmatprep.subr.mxu0 0.0
    %1059 = vmatpush1.msra.mxu0 0.0
    %1060 = vmatprep.subr.mxu0 0.0
    %1061 = vmatpush1.msra.mxu0 0.0
    %1062 = vmatprep.subr.mxu0 0.0
    %1063 = vmatpush1.msra.mxu0 0.0
    %1064 = vmatprep.subr.mxu0 0.0
    %1065 = vmatpush1.msra.mxu0 0.0
    %1066 = vmatprep.subr.mxu0 0.0
    %1067 = vmatpush1.msra.mxu0 0.0
    %1068 = vmatprep.subr.mxu0 0.0
    %1069 = vmatpush1.msra.mxu0 0.0
    %1070 = vmatprep.subr.mxu0 0.0
    %1071 = vmatpush1.msra.mxu0 0.0
    %1072 = vmatprep.subr.mxu0 0.0
    %1073 = vmatpush1.msra.mxu0 0.0
    %1074 = vmatprep.subr.mxu0 0.0
    %1075 = vmatpush1.msra.mxu0 0.0
    %1076 = vmatprep.subr.mxu0 0.0
    %1077 = vmatpush1.msra.mxu0 0.0
    %1078 = vmatprep.subr.mxu0 0.0
    %1079 = vmatpush1.msra.mxu0 0.0
    %1080 = vmatprep.subr.mxu0 %v1036
    %1081 = vmatpush1.msra.mxu0 %v1035
    %1082 = vmatprep.subr.mxu0 0.0
    %1083 = vmatpush2.msra.mxu0 0.0
    %1084 = vmatprep.subr.mxu0 0.0
    %1085 = vmatpush2.msra.mxu0 0.0
    %1086 = vmatprep.subr.mxu0 0.0
    %1087 = vmatpush2.msra.mxu0 0.0
    %1088 = vmatprep.subr.mxu0 0.0
    %1089 = vmatpush2.msra.mxu0 0.0
    %1090 = vmatprep.subr.mxu0 0.0
    %1091 = vmatpush2.msra.mxu0 0.0
    %1092 = vmatprep.subr.mxu0 0.0
    %1093 = vmatpush2.msra.mxu0 0.0
    %1094 = vmatprep.subr.mxu0 0.0
    %1095 = vmatpush2.msra.mxu0 0.0
    %1096 = vmatprep.subr.mxu0 0.0
    %1097 = vmatpush2.msra.mxu0 0.0
    %1098 = vmatprep.subr.mxu0 0.0
    %1099 = vmatpush2.msra.mxu0 0.0
    %1100 = vmatprep.subr.mxu0 0.0
    %1101 = vmatpush2.msra.mxu0 0.0
    %1102 = vmatprep.subr.mxu0 0.0
    %1103 = vmatpush2.msra.mxu0 0.0
    %1104 = vmatprep.subr.mxu0 0.0
    %1105 = vmatpush2.msra.mxu0 0.0
    %1106 = vmatprep.subr.mxu0 0.0
    %1107 = vmatpush2.msra.mxu0 0.0
    %1108 = vmatprep.subr.mxu0 0.0
    %1109 = vmatpush2.msra.mxu0 0.0
    %1110 = vmatprep.subr.mxu0 0.0
    %1111 = vmatpush2.msra.mxu0 0.0
    %1112 = vmatprep.subr.mxu0 0.0
    %1113 = vmatpush2.msra.mxu0 0.0
    %1114 = vmatprep.mubr.f32.mxu0 0.0
    %1115 = vmatmul.mubr.f32.gmra.mxu0 %v1048
    %v1116 = vpop.f32.mrf.mxu0
    %v1117 = vadd.f32 %v1044, %v1116
    %v1118 = vpop.f32.mrf.mxu0
    %v1119 = vadd.f32 %v1044, %v1118
    %1120 = vdwg.mxu0
    %1121 = vmatprep.subr.mxu0 0.0
    %1122 = vmatpush1.msra.mxu0 0.0
    %1123 = vmatprep.subr.mxu0 0.0
    %1124 = vmatpush1.msra.mxu0 0.0
    %1125 = vmatprep.subr.mxu0 0.0
    %1126 = vmatpush1.msra.mxu0 0.0
    %1127 = vmatprep.subr.mxu0 0.0
    %1128 = vmatpush1.msra.mxu0 0.0
    %1129 = vmatprep.subr.mxu0 0.0
    %1130 = vmatpush1.msra.mxu0 0.0
    %1131 = vmatprep.subr.mxu0 0.0
    %1132 = vmatpush1.msra.mxu0 0.0
    %1133 = vmatprep.subr.mxu0 0.0
    %1134 = vmatpush1.msra.mxu0 0.0
    %1135 = vmatprep.subr.mxu0 0.0
    %1136 = vmatpush1.msra.mxu0 0.0
    %1137 = vmatprep.subr.mxu0 0.0
    %1138 = vmatpush1.msra.mxu0 0.0
    %1139 = vmatprep.subr.mxu0 0.0
    %1140 = vmatpush1.msra.mxu0 0.0
    %1141 = vmatprep.subr.mxu0 0.0
    %1142 = vmatpush1.msra.mxu0 0.0
    %1143 = vmatprep.subr.mxu0 0.0
    %1144 = vmatpush1.msra.mxu0 0.0
    %1145 = vmatprep.subr.mxu0 0.0
    %1146 = vmatpush1.msra.mxu0 0.0
    %1147 = vmatprep.subr.mxu0 0.0
    %1148 = vmatpush1.msra.mxu0 0.0
    %1149 = vmatprep.subr.mxu0 0.0
    %1150 = vmatpush1.msra.mxu0 0.0
    %1151 = vmatprep.subr.mxu0 %v1038
    %1152 = vmatpush1.msra.mxu0 %v1037
    %1153 = vmatprep.subr.mxu0 0.0
    %1154 = vmatpush2.msra.mxu0 0.0
    %1155 = vmatprep.subr.mxu0 0.0
    %1156 = vmatpush2.msra.mxu0 0.0
    %1157 = vmatprep.subr.mxu0 0.0
    %1158 = vmatpush2.msra.mxu0 0.0
    %1159 = vmatprep.subr.mxu0 0.0
    %1160 = vmatpush2.msra.mxu0 0.0
    %1161 = vmatprep.subr.mxu0 0.0
    %1162 = vmatpush2.msra.mxu0 0.0
    %1163 = vmatprep.subr.mxu0 0.0
    %1164 = vmatpush2.msra.mxu0 0.0
    %1165 = vmatprep.subr.mxu0 0.0
    %1166 = vmatpush2.msra.mxu0 0.0
    %1167 = vmatprep.subr.mxu0 0.0
    %1168 = vmatpush2.msra.mxu0 0.0
    %1169 = vmatprep.subr.mxu0 0.0
    %1170 = vmatpush2.msra.mxu0 0.0
    %1171 = vmatprep.subr.mxu0 0.0
    %1172 = vmatpush2.msra.mxu0 0.0
    %1173 = vmatprep.subr.mxu0 0.0
    %1174 = vmatpush2.msra.mxu0 0.0
    %1175 = vmatprep.subr.mxu0 0.0
    %1176 = vmatpush2.msra.mxu0 0.0
    %1177 = vmatprep.subr.mxu0 0.0
    %1178 = vmatpush2.msra.mxu0 0.0
    %1179 = vmatprep.subr.mxu0 0.0
    %1180 = vmatpush2.msra.mxu0 0.0
    %1181 = vmatprep.subr.mxu0 0.0
    %1182 = vmatpush2.msra.mxu0 0.0
    %1183 = vmatprep.subr.mxu0 0.0
    %1184 = vmatpush2.msra.mxu0 0.0
    %1185 = vmatprep.mubr.f32.mxu0 0.0
    %1186 = vmatmul.mubr.f32.gmra.mxu0 %v1048
    %v1187 = vpop.f32.mrf.mxu0
    %v1188 = vadd.f32 %v1044, %v1187
    %v1189 = vpop.f32.mrf.mxu0
    %v1190 = vadd.f32 %v1044, %v1189
    %1191 = vdwg.mxu0
    %v1192 = vadd.f32 %v1117, %v1119
    %v1193 = vadd.f32 %v1192, %v1188
    %v1194 = vadd.f32 %v1193, %v1190
    %1195 = vadd.xlane.f32.xlu0 %v1194
    %v1196 = vpop.xlane.xlu0 %1195
    %v1197 = vmul.f32 %v1117, %v1117
    %v1198 = vmul.f32 %v1119, %v1119
    %v1199 = vmul.f32 %v1188, %v1188
    %v1200 = vmul.f32 %v1190, %v1190
    %v1201 = vadd.f32 %v1197, %v1198
    %v1202 = vadd.f32 %v1201, %v1199
    %v1203 = vadd.f32 %v1202, %v1200
    %1204 = vadd.xlane.f32.xlu0 %v1203
    %v1205 = vpop.xlane.xlu0 %1204
    %v1206 = vld [vmem:[%s5] sm:$0xf]
    %vm1207 = vcmask 7168
    %v1208 = vsel %vm1207, %v1196, %v1205
    %v1210 = vsel %vm1046, %v1206, 0
    %1212 = vmatprep.subr.mxu0 0.0
    %1213 = vmatpush1.msra.mxu0 0.0
    %1214 = vmatprep.subr.mxu0 0.0
    %1215 = vmatpush1.msra.mxu0 0.0
    %1216 = vmatprep.subr.mxu0 0.0
    %1217 = vmatpush1.msra.mxu0 0.0
    %1218 = vmatprep.subr.mxu0 0.0
    %1219 = vmatpush1.msra.mxu0 0.0
    %1220 = vmatprep.subr.mxu0 0.0
    %1221 = vmatpush1.msra.mxu0 0.0
    %1222 = vmatprep.subr.mxu0 0.0
    %1223 = vmatpush1.msra.mxu0 0.0
    %1224 = vmatprep.subr.mxu0 0.0
    %1225 = vmatpush1.msra.mxu0 0.0
    %1226 = vmatprep.subr.mxu0 0.0
    %1227 = vmatpush1.msra.mxu0 0.0
    %1228 = vmatprep.subr.mxu0 0.0
    %1229 = vmatpush1.msra.mxu0 0.0
    %1230 = vmatprep.subr.mxu0 0.0
    %1231 = vmatpush1.msra.mxu0 0.0
    %1232 = vmatprep.subr.mxu0 0.0
    %1233 = vmatpush1.msra.mxu0 0.0
    %1234 = vmatprep.subr.mxu0 0.0
    %1235 = vmatpush1.msra.mxu0 0.0
    %1236 = vmatprep.subr.mxu0 0.0
    %1237 = vmatpush1.msra.mxu0 0.0
    %1238 = vmatprep.subr.mxu0 0.0
    %1239 = vmatpush1.msra.mxu0 0.0
    %1240 = vmatprep.subr.mxu0 0.0
    %1241 = vmatpush1.msra.mxu0 0.0
    %1242 = vmatprep.subr.mxu0 0.0
    %v1243 = vand.u32 %v1208, 4294901760
    %1244 = vmatpush1.msra.mxu0 %v1243
    %1245 = vmatprep.subr.mxu0 0.0
    %1246 = vmatpush2.msra.mxu0 0.0
    %1247 = vmatprep.subr.mxu0 0.0
    %1248 = vmatpush2.msra.mxu0 0.0
    %1249 = vmatprep.subr.mxu0 0.0
    %1250 = vmatpush2.msra.mxu0 0.0
    %1251 = vmatprep.subr.mxu0 0.0
    %1252 = vmatpush2.msra.mxu0 0.0
    %1253 = vmatprep.subr.mxu0 0.0
    %1254 = vmatpush2.msra.mxu0 0.0
    %1255 = vmatprep.subr.mxu0 0.0
    %1256 = vmatpush2.msra.mxu0 0.0
    %1257 = vmatprep.subr.mxu0 0.0
    %1258 = vmatpush2.msra.mxu0 0.0
    %1259 = vmatprep.subr.mxu0 0.0
    %1260 = vmatpush2.msra.mxu0 0.0
    %1261 = vmatprep.subr.mxu0 0.0
    %1262 = vmatpush2.msra.mxu0 0.0
    %1263 = vmatprep.subr.mxu0 0.0
    %1264 = vmatpush2.msra.mxu0 0.0
    %1265 = vmatprep.subr.mxu0 0.0
    %1266 = vmatpush2.msra.mxu0 0.0
    %1267 = vmatprep.subr.mxu0 0.0
    %1268 = vmatpush2.msra.mxu0 0.0
    %1269 = vmatprep.subr.mxu0 0.0
    %1270 = vmatpush2.msra.mxu0 0.0
    %1271 = vmatprep.subr.mxu0 0.0
    %1272 = vmatpush2.msra.mxu0 0.0
    %1273 = vmatprep.subr.mxu0 0.0
    %1274 = vmatpush2.msra.mxu0 0.0
    %1275 = vmatprep.subr.mxu0 0.0
    %1276 = vmatpush2.msra.mxu0 0.0
    %1277 = vmatprep.mubr.f32.mxu0 0.0
    %v1278 = vand.u32 %v1210, 4294901760
    %v1279 = vsub.f32 %v1210, %v1278
    %v1280 = vand.u32 %v1279, 4294901760
    %v1281 = vsub.f32 %v1279, %v1280
    %v1282 = vand.u32 %v1281, 4294901760
    %1283 = vmatmul.mubr.f32.gmra.mxu0 %v1282
    %v1284 = vpop.f32.mrf.mxu0
    %v1285 = vadd.f32 0.0, %v1284
    %v1286 = vpop.f32.mrf.mxu0
    %1287 = vdwg.mxu0
    %1288 = vmatprep.subr.mxu0 0.0
    %1289 = vmatpush1.msra.mxu0 0.0
    %1290 = vmatprep.subr.mxu0 0.0
    %1291 = vmatpush1.msra.mxu0 0.0
    %1292 = vmatprep.subr.mxu0 0.0
    %1293 = vmatpush1.msra.mxu0 0.0
    %1294 = vmatprep.subr.mxu0 0.0
    %1295 = vmatpush1.msra.mxu0 0.0
    %1296 = vmatprep.subr.mxu0 0.0
    %1297 = vmatpush1.msra.mxu0 0.0
    %1298 = vmatprep.subr.mxu0 0.0
    %1299 = vmatpush1.msra.mxu0 0.0
    %1300 = vmatprep.subr.mxu0 0.0
    %1301 = vmatpush1.msra.mxu0 0.0
    %1302 = vmatprep.subr.mxu0 0.0
    %1303 = vmatpush1.msra.mxu0 0.0
    %1304 = vmatprep.subr.mxu0 0.0
    %1305 = vmatpush1.msra.mxu0 0.0
    %1306 = vmatprep.subr.mxu0 0.0
    %1307 = vmatpush1.msra.mxu0 0.0
    %1308 = vmatprep.subr.mxu0 0.0
    %1309 = vmatpush1.msra.mxu0 0.0
    %1310 = vmatprep.subr.mxu0 0.0
    %1311 = vmatpush1.msra.mxu0 0.0
    %1312 = vmatprep.subr.mxu0 0.0
    %1313 = vmatpush1.msra.mxu0 0.0
    %1314 = vmatprep.subr.mxu0 0.0
    %1315 = vmatpush1.msra.mxu0 0.0
    %1316 = vmatprep.subr.mxu0 0.0
    %1317 = vmatpush1.msra.mxu0 0.0
    %1318 = vmatprep.subr.mxu0 0.0
    %v1319 = vand.u32 %v1208, 4294901760
    %v1320 = vsub.f32 %v1208, %v1319
    %v1321 = vand.u32 %v1320, 4294901760
    %v1322 = vsub.f32 %v1320, %v1321
    %v1323 = vand.u32 %v1322, 4294901760
    %1324 = vmatpush1.msra.mxu0 %v1323
    %1325 = vmatprep.subr.mxu0 0.0
    %1326 = vmatpush2.msra.mxu0 0.0
    %1327 = vmatprep.subr.mxu0 0.0
    %1328 = vmatpush2.msra.mxu0 0.0
    %1329 = vmatprep.subr.mxu0 0.0
    %1330 = vmatpush2.msra.mxu0 0.0
    %1331 = vmatprep.subr.mxu0 0.0
    %1332 = vmatpush2.msra.mxu0 0.0
    %1333 = vmatprep.subr.mxu0 0.0
    %1334 = vmatpush2.msra.mxu0 0.0
    %1335 = vmatprep.subr.mxu0 0.0
    %1336 = vmatpush2.msra.mxu0 0.0
    %1337 = vmatprep.subr.mxu0 0.0
    %1338 = vmatpush2.msra.mxu0 0.0
    %1339 = vmatprep.subr.mxu0 0.0
    %1340 = vmatpush2.msra.mxu0 0.0
    %1341 = vmatprep.subr.mxu0 0.0
    %1342 = vmatpush2.msra.mxu0 0.0
    %1343 = vmatprep.subr.mxu0 0.0
    %1344 = vmatpush2.msra.mxu0 0.0
    %1345 = vmatprep.subr.mxu0 0.0
    %1346 = vmatpush2.msra.mxu0 0.0
    %1347 = vmatprep.subr.mxu0 0.0
    %1348 = vmatpush2.msra.mxu0 0.0
    %1349 = vmatprep.subr.mxu0 0.0
    %1350 = vmatpush2.msra.mxu0 0.0
    %1351 = vmatprep.subr.mxu0 0.0
    %1352 = vmatpush2.msra.mxu0 0.0
    %1353 = vmatprep.subr.mxu0 0.0
    %1354 = vmatpush2.msra.mxu0 0.0
    %1355 = vmatprep.subr.mxu0 0.0
    %1356 = vmatpush2.msra.mxu0 0.0
    %1357 = vmatprep.mubr.f32.mxu0 0.0
    %v1358 = vand.u32 %v1210, 4294901760
    %1359 = vmatmul.mubr.f32.gmra.mxu0 %v1358
    %v1360 = vpop.f32.mrf.mxu0
    %v1361 = vadd.f32 %v1285, %v1360
    %v1362 = vpop.f32.mrf.mxu0
    %1363 = vdwg.mxu0
    %1364 = vmatprep.subr.mxu0 0.0
    %1365 = vmatpush1.msra.mxu0 0.0
    %1366 = vmatprep.subr.mxu0 0.0
    %1367 = vmatpush1.msra.mxu0 0.0
    %1368 = vmatprep.subr.mxu0 0.0
    %1369 = vmatpush1.msra.mxu0 0.0
    %1370 = vmatprep.subr.mxu0 0.0
    %1371 = vmatpush1.msra.mxu0 0.0
    %1372 = vmatprep.subr.mxu0 0.0
    %1373 = vmatpush1.msra.mxu0 0.0
    %1374 = vmatprep.subr.mxu0 0.0
    %1375 = vmatpush1.msra.mxu0 0.0
    %1376 = vmatprep.subr.mxu0 0.0
    %1377 = vmatpush1.msra.mxu0 0.0
    %1378 = vmatprep.subr.mxu0 0.0
    %1379 = vmatpush1.msra.mxu0 0.0
    %1380 = vmatprep.subr.mxu0 0.0
    %1381 = vmatpush1.msra.mxu0 0.0
    %1382 = vmatprep.subr.mxu0 0.0
    %1383 = vmatpush1.msra.mxu0 0.0
    %1384 = vmatprep.subr.mxu0 0.0
    %1385 = vmatpush1.msra.mxu0 0.0
    %1386 = vmatprep.subr.mxu0 0.0
    %1387 = vmatpush1.msra.mxu0 0.0
    %1388 = vmatprep.subr.mxu0 0.0
    %1389 = vmatpush1.msra.mxu0 0.0
    %1390 = vmatprep.subr.mxu0 0.0
    %1391 = vmatpush1.msra.mxu0 0.0
    %1392 = vmatprep.subr.mxu0 0.0
    %1393 = vmatpush1.msra.mxu0 0.0
    %1394 = vmatprep.subr.mxu0 0.0
    %v1395 = vand.u32 %v1208, 4294901760
    %v1396 = vsub.f32 %v1208, %v1395
    %1397 = vmatpush1.msra.mxu0 %v1396
    %1398 = vmatprep.subr.mxu0 0.0
    %1399 = vmatpush2.msra.mxu0 0.0
    %1400 = vmatprep.subr.mxu0 0.0
    %1401 = vmatpush2.msra.mxu0 0.0
    %1402 = vmatprep.subr.mxu0 0.0
    %1403 = vmatpush2.msra.mxu0 0.0
    %1404 = vmatprep.subr.mxu0 0.0
    %1405 = vmatpush2.msra.mxu0 0.0
    %1406 = vmatprep.subr.mxu0 0.0
    %1407 = vmatpush2.msra.mxu0 0.0
    %1408 = vmatprep.subr.mxu0 0.0
    %1409 = vmatpush2.msra.mxu0 0.0
    %1410 = vmatprep.subr.mxu0 0.0
    %1411 = vmatpush2.msra.mxu0 0.0
    %1412 = vmatprep.subr.mxu0 0.0
    %1413 = vmatpush2.msra.mxu0 0.0
    %1414 = vmatprep.subr.mxu0 0.0
    %1415 = vmatpush2.msra.mxu0 0.0
    %1416 = vmatprep.subr.mxu0 0.0
    %1417 = vmatpush2.msra.mxu0 0.0
    %1418 = vmatprep.subr.mxu0 0.0
    %1419 = vmatpush2.msra.mxu0 0.0
    %1420 = vmatprep.subr.mxu0 0.0
    %1421 = vmatpush2.msra.mxu0 0.0
    %1422 = vmatprep.subr.mxu0 0.0
    %1423 = vmatpush2.msra.mxu0 0.0
    %1424 = vmatprep.subr.mxu0 0.0
    %1425 = vmatpush2.msra.mxu0 0.0
    %1426 = vmatprep.subr.mxu0 0.0
    %1427 = vmatpush2.msra.mxu0 0.0
    %1428 = vmatprep.subr.mxu0 0.0
    %1429 = vmatpush2.msra.mxu0 0.0
    %1430 = vmatprep.mubr.f32.mxu0 0.0
    %v1431 = vand.u32 %v1210, 4294901760
    %v1432 = vsub.f32 %v1210, %v1431
    %1433 = vmatmul.mubr.f32.gmra.mxu0 %v1432
    %v1434 = vpop.f32.mrf.mxu0
    %v1435 = vadd.f32 %v1361, %v1434
    %v1436 = vpop.f32.mrf.mxu0
    %1437 = vdwg.mxu0
    %1438 = vmatprep.subr.mxu0 0.0
    %1439 = vmatpush1.msra.mxu0 0.0
    %1440 = vmatprep.subr.mxu0 0.0
    %1441 = vmatpush1.msra.mxu0 0.0
    %1442 = vmatprep.subr.mxu0 0.0
    %1443 = vmatpush1.msra.mxu0 0.0
    %1444 = vmatprep.subr.mxu0 0.0
    %1445 = vmatpush1.msra.mxu0 0.0
    %1446 = vmatprep.subr.mxu0 0.0
    %1447 = vmatpush1.msra.mxu0 0.0
    %1448 = vmatprep.subr.mxu0 0.0
    %1449 = vmatpush1.msra.mxu0 0.0
    %1450 = vmatprep.subr.mxu0 0.0
    %1451 = vmatpush1.msra.mxu0 0.0
    %1452 = vmatprep.subr.mxu0 0.0
    %1453 = vmatpush1.msra.mxu0 0.0
    %1454 = vmatprep.subr.mxu0 0.0
    %1455 = vmatpush1.msra.mxu0 0.0
    %1456 = vmatprep.subr.mxu0 0.0
    %1457 = vmatpush1.msra.mxu0 0.0
    %1458 = vmatprep.subr.mxu0 0.0
    %1459 = vmatpush1.msra.mxu0 0.0
    %1460 = vmatprep.subr.mxu0 0.0
    %1461 = vmatpush1.msra.mxu0 0.0
    %1462 = vmatprep.subr.mxu0 0.0
    %1463 = vmatpush1.msra.mxu0 0.0
    %1464 = vmatprep.subr.mxu0 0.0
    %1465 = vmatpush1.msra.mxu0 0.0
    %1466 = vmatprep.subr.mxu0 0.0
    %1467 = vmatpush1.msra.mxu0 0.0
    %1468 = vmatprep.subr.mxu0 0.0
    %v1469 = vand.u32 %v1208, 4294901760
    %1470 = vmatpush1.msra.mxu0 %v1469
    %1471 = vmatprep.subr.mxu0 0.0
    %1472 = vmatpush2.msra.mxu0 0.0
    %1473 = vmatprep.subr.mxu0 0.0
    %1474 = vmatpush2.msra.mxu0 0.0
    %1475 = vmatprep.subr.mxu0 0.0
    %1476 = vmatpush2.msra.mxu0 0.0
    %1477 = vmatprep.subr.mxu0 0.0
    %1478 = vmatpush2.msra.mxu0 0.0
    %1479 = vmatprep.subr.mxu0 0.0
    %1480 = vmatpush2.msra.mxu0 0.0
    %1481 = vmatprep.subr.mxu0 0.0
    %1482 = vmatpush2.msra.mxu0 0.0
    %1483 = vmatprep.subr.mxu0 0.0
    %1484 = vmatpush2.msra.mxu0 0.0
    %1485 = vmatprep.subr.mxu0 0.0
    %1486 = vmatpush2.msra.mxu0 0.0
    %1487 = vmatprep.subr.mxu0 0.0
    %1488 = vmatpush2.msra.mxu0 0.0
    %1489 = vmatprep.subr.mxu0 0.0
    %1490 = vmatpush2.msra.mxu0 0.0
    %1491 = vmatprep.subr.mxu0 0.0
    %1492 = vmatpush2.msra.mxu0 0.0
    %1493 = vmatprep.subr.mxu0 0.0
    %1494 = vmatpush2.msra.mxu0 0.0
    %1495 = vmatprep.subr.mxu0 0.0
    %1496 = vmatpush2.msra.mxu0 0.0
    %1497 = vmatprep.subr.mxu0 0.0
    %1498 = vmatpush2.msra.mxu0 0.0
    %1499 = vmatprep.subr.mxu0 0.0
    %1500 = vmatpush2.msra.mxu0 0.0
    %1501 = vmatprep.subr.mxu0 0.0
    %1502 = vmatpush2.msra.mxu0 0.0
    %1503 = vmatprep.mubr.f32.mxu0 0.0
    %v1504 = vand.u32 %v1210, 4294901760
    %v1505 = vsub.f32 %v1210, %v1504
    %v1506 = vand.u32 %v1505, 4294901760
    %1507 = vmatmul.mubr.f32.gmra.mxu0 %v1506
    %v1508 = vpop.f32.mrf.mxu0
    %v1509 = vadd.f32 %v1435, %v1508
    %v1510 = vpop.f32.mrf.mxu0
    %1511 = vdwg.mxu0
    %1512 = vmatprep.subr.mxu0 0.0
    %1513 = vmatpush1.msra.mxu0 0.0
    %1514 = vmatprep.subr.mxu0 0.0
    %1515 = vmatpush1.msra.mxu0 0.0
    %1516 = vmatprep.subr.mxu0 0.0
    %1517 = vmatpush1.msra.mxu0 0.0
    %1518 = vmatprep.subr.mxu0 0.0
    %1519 = vmatpush1.msra.mxu0 0.0
    %1520 = vmatprep.subr.mxu0 0.0
    %1521 = vmatpush1.msra.mxu0 0.0
    %1522 = vmatprep.subr.mxu0 0.0
    %1523 = vmatpush1.msra.mxu0 0.0
    %1524 = vmatprep.subr.mxu0 0.0
    %1525 = vmatpush1.msra.mxu0 0.0
    %1526 = vmatprep.subr.mxu0 0.0
    %1527 = vmatpush1.msra.mxu0 0.0
    %1528 = vmatprep.subr.mxu0 0.0
    %1529 = vmatpush1.msra.mxu0 0.0
    %1530 = vmatprep.subr.mxu0 0.0
    %1531 = vmatpush1.msra.mxu0 0.0
    %1532 = vmatprep.subr.mxu0 0.0
    %1533 = vmatpush1.msra.mxu0 0.0
    %1534 = vmatprep.subr.mxu0 0.0
    %1535 = vmatpush1.msra.mxu0 0.0
    %1536 = vmatprep.subr.mxu0 0.0
    %1537 = vmatpush1.msra.mxu0 0.0
    %1538 = vmatprep.subr.mxu0 0.0
    %1539 = vmatpush1.msra.mxu0 0.0
    %1540 = vmatprep.subr.mxu0 0.0
    %1541 = vmatpush1.msra.mxu0 0.0
    %1542 = vmatprep.subr.mxu0 0.0
    %v1543 = vand.u32 %v1208, 4294901760
    %v1544 = vsub.f32 %v1208, %v1543
    %v1545 = vand.u32 %v1544, 4294901760
    %1546 = vmatpush1.msra.mxu0 %v1545
    %1547 = vmatprep.subr.mxu0 0.0
    %1548 = vmatpush2.msra.mxu0 0.0
    %1549 = vmatprep.subr.mxu0 0.0
    %1550 = vmatpush2.msra.mxu0 0.0
    %1551 = vmatprep.subr.mxu0 0.0
    %1552 = vmatpush2.msra.mxu0 0.0
    %1553 = vmatprep.subr.mxu0 0.0
    %1554 = vmatpush2.msra.mxu0 0.0
    %1555 = vmatprep.subr.mxu0 0.0
    %1556 = vmatpush2.msra.mxu0 0.0
    %1557 = vmatprep.subr.mxu0 0.0
    %1558 = vmatpush2.msra.mxu0 0.0
    %1559 = vmatprep.subr.mxu0 0.0
    %1560 = vmatpush2.msra.mxu0 0.0
    %1561 = vmatprep.subr.mxu0 0.0
    %1562 = vmatpush2.msra.mxu0 0.0
    %1563 = vmatprep.subr.mxu0 0.0
    %1564 = vmatpush2.msra.mxu0 0.0
    %1565 = vmatprep.subr.mxu0 0.0
    %1566 = vmatpush2.msra.mxu0 0.0
    %1567 = vmatprep.subr.mxu0 0.0
    %1568 = vmatpush2.msra.mxu0 0.0
    %1569 = vmatprep.subr.mxu0 0.0
    %1570 = vmatpush2.msra.mxu0 0.0
    %1571 = vmatprep.subr.mxu0 0.0
    %1572 = vmatpush2.msra.mxu0 0.0
    %1573 = vmatprep.subr.mxu0 0.0
    %1574 = vmatpush2.msra.mxu0 0.0
    %1575 = vmatprep.subr.mxu0 0.0
    %1576 = vmatpush2.msra.mxu0 0.0
    %1577 = vmatprep.subr.mxu0 0.0
    %1578 = vmatpush2.msra.mxu0 0.0
    %1579 = vmatprep.mubr.f32.mxu0 0.0
    %v1580 = vand.u32 %v1210, 4294901760
    %1581 = vmatmul.mubr.f32.gmra.mxu0 %v1580
    %v1582 = vpop.f32.mrf.mxu0
    %v1583 = vadd.f32 %v1509, %v1582
    %v1584 = vpop.f32.mrf.mxu0
    %1585 = vdwg.mxu0
    %1586 = vmatprep.subr.mxu0 0.0
    %1587 = vmatpush1.msra.mxu0 0.0
    %1588 = vmatprep.subr.mxu0 0.0
    %1589 = vmatpush1.msra.mxu0 0.0
    %1590 = vmatprep.subr.mxu0 0.0
    %1591 = vmatpush1.msra.mxu0 0.0
    %1592 = vmatprep.subr.mxu0 0.0
    %1593 = vmatpush1.msra.mxu0 0.0
    %1594 = vmatprep.subr.mxu0 0.0
    %1595 = vmatpush1.msra.mxu0 0.0
    %1596 = vmatprep.subr.mxu0 0.0
    %1597 = vmatpush1.msra.mxu0 0.0
    %1598 = vmatprep.subr.mxu0 0.0
    %1599 = vmatpush1.msra.mxu0 0.0
    %1600 = vmatprep.subr.mxu0 0.0
    %1601 = vmatpush1.msra.mxu0 0.0
    %1602 = vmatprep.subr.mxu0 0.0
    %1603 = vmatpush1.msra.mxu0 0.0
    %1604 = vmatprep.subr.mxu0 0.0
    %1605 = vmatpush1.msra.mxu0 0.0
    %1606 = vmatprep.subr.mxu0 0.0
    %1607 = vmatpush1.msra.mxu0 0.0
    %1608 = vmatprep.subr.mxu0 0.0
    %1609 = vmatpush1.msra.mxu0 0.0
    %1610 = vmatprep.subr.mxu0 0.0
    %1611 = vmatpush1.msra.mxu0 0.0
    %1612 = vmatprep.subr.mxu0 0.0
    %1613 = vmatpush1.msra.mxu0 0.0
    %1614 = vmatprep.subr.mxu0 0.0
    %1615 = vmatpush1.msra.mxu0 0.0
    %1616 = vmatprep.subr.mxu0 0.0
    %v1617 = vand.u32 %v1208, 4294901760
    %1618 = vmatpush1.msra.mxu0 %v1617
    %1619 = vmatprep.subr.mxu0 0.0
    %1620 = vmatpush2.msra.mxu0 0.0
    %1621 = vmatprep.subr.mxu0 0.0
    %1622 = vmatpush2.msra.mxu0 0.0
    %1623 = vmatprep.subr.mxu0 0.0
    %1624 = vmatpush2.msra.mxu0 0.0
    %1625 = vmatprep.subr.mxu0 0.0
    %1626 = vmatpush2.msra.mxu0 0.0
    %1627 = vmatprep.subr.mxu0 0.0
    %1628 = vmatpush2.msra.mxu0 0.0
    %1629 = vmatprep.subr.mxu0 0.0
    %1630 = vmatpush2.msra.mxu0 0.0
    %1631 = vmatprep.subr.mxu0 0.0
    %1632 = vmatpush2.msra.mxu0 0.0
    %1633 = vmatprep.subr.mxu0 0.0
    %1634 = vmatpush2.msra.mxu0 0.0
    %1635 = vmatprep.subr.mxu0 0.0
    %1636 = vmatpush2.msra.mxu0 0.0
    %1637 = vmatprep.subr.mxu0 0.0
    %1638 = vmatpush2.msra.mxu0 0.0
    %1639 = vmatprep.subr.mxu0 0.0
    %1640 = vmatpush2.msra.mxu0 0.0
    %1641 = vmatprep.subr.mxu0 0.0
    %1642 = vmatpush2.msra.mxu0 0.0
    %1643 = vmatprep.subr.mxu0 0.0
    %1644 = vmatpush2.msra.mxu0 0.0
    %1645 = vmatprep.subr.mxu0 0.0
    %1646 = vmatpush2.msra.mxu0 0.0
    %1647 = vmatprep.subr.mxu0 0.0
    %1648 = vmatpush2.msra.mxu0 0.0
    %1649 = vmatprep.subr.mxu0 0.0
    %1650 = vmatpush2.msra.mxu0 0.0
    %1651 = vmatprep.mubr.f32.mxu0 0.0
    %v1652 = vand.u32 %v1210, 4294901760
    %1653 = vmatmul.mubr.f32.gmra.mxu0 %v1652
    %v1654 = vpop.f32.mrf.mxu0
    %v1655 = vadd.f32 %v1583, %v1654
    %v1656 = vpop.f32.mrf.mxu0
    %1657 = vdwg.mxu0
    %v1658 = vmul.f32 %v1655, 0.0009765625
    %v1659 = vmul.f32 %v1658, %v1658
    %1661 = vrot.lane.b32.xlu0 %v1659, 1
    %v1662 = vpop.permute.xlu0 %1661
    %v1664 = vsub.f32 %v1658, %v1662
    %v1665 = vmax.f32 %v1664, 0.0
    %v1666 = vld [vmem:[%s6] sm:$0xf]
    %v1667 = vadd.f32 %v1665, 1e-05
    %v1668 = vrsqrt.pop %v1667
    %1670 = vrot.lane.b32.xlu0 %v1668, 127
    %v1671 = vpop.permute.xlu0 %1670
    %v1673 = vmul.f32 %v1666, %v1671
    %v1674 = vld [vmem:[%s7] sm:$0xf]
    %v1675 = vmul.f32 %v1658, %v1673
    %v1676 = vsub.f32 %v1674, %v1675
    %v1677 = vld [vmem:[%s4] sm:$0xff]
    %1679 = vrot.lane.b32.xlu0 %v1676, 1
    %v1680 = vpop.permute.xlu0 %1679
    %v1682 = vsel %vm1207, %v1673, %v1680
    %vm1683 = vcmask 31744
    %v1685 = vsel %vm1683, %v1677, 0
    %vm1687 = vcmask 1043456
    %v1689 = vsel %vm1687, %v1682, 0
    %1691 = vmatprep.subr.mxu0 0.0
    %1692 = vmatpush1.msra.mxu0 0.0
    %1693 = vmatprep.subr.mxu0 0.0
    %1694 = vmatpush1.msra.mxu0 0.0
    %1695 = vmatprep.subr.mxu0 0.0
    %1696 = vmatpush1.msra.mxu0 0.0
    %1697 = vmatprep.subr.mxu0 0.0
    %1698 = vmatpush1.msra.mxu0 0.0
    %1699 = vmatprep.subr.mxu0 0.0
    %1700 = vmatpush1.msra.mxu0 0.0
    %1701 = vmatprep.subr.mxu0 0.0
    %1702 = vmatpush1.msra.mxu0 0.0
    %1703 = vmatprep.subr.mxu0 0.0
    %1704 = vmatpush1.msra.mxu0 0.0
    %1705 = vmatprep.subr.mxu0 0.0
    %1706 = vmatpush1.msra.mxu0 0.0
    %1707 = vmatprep.subr.mxu0 0.0
    %1708 = vmatpush1.msra.mxu0 0.0
    %1709 = vmatprep.subr.mxu0 0.0
    %1710 = vmatpush1.msra.mxu0 0.0
    %1711 = vmatprep.subr.mxu0 0.0
    %1712 = vmatpush1.msra.mxu0 0.0
    %1713 = vmatprep.subr.mxu0 0.0
    %1714 = vmatpush1.msra.mxu0 0.0
    %1715 = vmatprep.subr.mxu0 0.0
    %1716 = vmatpush1.msra.mxu0 0.0
    %1717 = vmatprep.subr.mxu0 0.0
    %1718 = vmatpush1.msra.mxu0 0.0
    %1719 = vmatprep.subr.mxu0 0.0
    %1720 = vmatpush1.msra.mxu0 0.0
    %1721 = vmatprep.subr.mxu0 0.0
    %v1722 = vand.u32 %v1689, 4294901760
    %1723 = vmatpush1.msra.mxu0 %v1722
    %1724 = vmatprep.subr.mxu0 0.0
    %1725 = vmatpush2.msra.mxu0 0.0
    %1726 = vmatprep.subr.mxu0 0.0
    %1727 = vmatpush2.msra.mxu0 0.0
    %1728 = vmatprep.subr.mxu0 0.0
    %1729 = vmatpush2.msra.mxu0 0.0
    %1730 = vmatprep.subr.mxu0 0.0
    %1731 = vmatpush2.msra.mxu0 0.0
    %1732 = vmatprep.subr.mxu0 0.0
    %1733 = vmatpush2.msra.mxu0 0.0
    %1734 = vmatprep.subr.mxu0 0.0
    %1735 = vmatpush2.msra.mxu0 0.0
    %1736 = vmatprep.subr.mxu0 0.0
    %1737 = vmatpush2.msra.mxu0 0.0
    %1738 = vmatprep.subr.mxu0 0.0
    %1739 = vmatpush2.msra.mxu0 0.0
    %1740 = vmatprep.subr.mxu0 0.0
    %1741 = vmatpush2.msra.mxu0 0.0
    %1742 = vmatprep.subr.mxu0 0.0
    %1743 = vmatpush2.msra.mxu0 0.0
    %1744 = vmatprep.subr.mxu0 0.0
    %1745 = vmatpush2.msra.mxu0 0.0
    %1746 = vmatprep.subr.mxu0 0.0
    %1747 = vmatpush2.msra.mxu0 0.0
    %1748 = vmatprep.subr.mxu0 0.0
    %1749 = vmatpush2.msra.mxu0 0.0
    %1750 = vmatprep.subr.mxu0 0.0
    %1751 = vmatpush2.msra.mxu0 0.0
    %1752 = vmatprep.subr.mxu0 0.0
    %1753 = vmatpush2.msra.mxu0 0.0
    %1754 = vmatprep.subr.mxu0 0.0
    %1755 = vmatpush2.msra.mxu0 0.0
    %1756 = vmatprep.mubr.f32.mxu0 0.0
    %v1757 = vand.u32 %v1685, 4294901760
    %v1758 = vsub.f32 %v1685, %v1757
    %v1759 = vand.u32 %v1758, 4294901760
    %v1760 = vsub.f32 %v1758, %v1759
    %v1761 = vand.u32 %v1760, 4294901760
    %1762 = vmatmul.mubr.f32.gmra.mxu0 %v1761
    %v1763 = vpop.f32.mrf.mxu0
    %v1764 = vadd.f32 0.0, %v1763
    %v1765 = vpop.f32.mrf.mxu0
    %1766 = vdwg.mxu0
    %1767 = vmatprep.subr.mxu0 0.0
    %1768 = vmatpush1.msra.mxu0 0.0
    %1769 = vmatprep.subr.mxu0 0.0
    %1770 = vmatpush1.msra.mxu0 0.0
    %1771 = vmatprep.subr.mxu0 0.0
    %1772 = vmatpush1.msra.mxu0 0.0
    %1773 = vmatprep.subr.mxu0 0.0
    %1774 = vmatpush1.msra.mxu0 0.0
    %1775 = vmatprep.subr.mxu0 0.0
    %1776 = vmatpush1.msra.mxu0 0.0
    %1777 = vmatprep.subr.mxu0 0.0
    %1778 = vmatpush1.msra.mxu0 0.0
    %1779 = vmatprep.subr.mxu0 0.0
    %1780 = vmatpush1.msra.mxu0 0.0
    %1781 = vmatprep.subr.mxu0 0.0
    %1782 = vmatpush1.msra.mxu0 0.0
    %1783 = vmatprep.subr.mxu0 0.0
    %1784 = vmatpush1.msra.mxu0 0.0
    %1785 = vmatprep.subr.mxu0 0.0
    %1786 = vmatpush1.msra.mxu0 0.0
    %1787 = vmatprep.subr.mxu0 0.0
    %1788 = vmatpush1.msra.mxu0 0.0
    %1789 = vmatprep.subr.mxu0 0.0
    %1790 = vmatpush1.msra.mxu0 0.0
    %1791 = vmatprep.subr.mxu0 0.0
    %1792 = vmatpush1.msra.mxu0 0.0
    %1793 = vmatprep.subr.mxu0 0.0
    %1794 = vmatpush1.msra.mxu0 0.0
    %1795 = vmatprep.subr.mxu0 0.0
    %1796 = vmatpush1.msra.mxu0 0.0
    %1797 = vmatprep.subr.mxu0 0.0
    %v1798 = vand.u32 %v1689, 4294901760
    %v1799 = vsub.f32 %v1689, %v1798
    %v1800 = vand.u32 %v1799, 4294901760
    %v1801 = vsub.f32 %v1799, %v1800
    %v1802 = vand.u32 %v1801, 4294901760
    %1803 = vmatpush1.msra.mxu0 %v1802
    %1804 = vmatprep.subr.mxu0 0.0
    %1805 = vmatpush2.msra.mxu0 0.0
    %1806 = vmatprep.subr.mxu0 0.0
    %1807 = vmatpush2.msra.mxu0 0.0
    %1808 = vmatprep.subr.mxu0 0.0
    %1809 = vmatpush2.msra.mxu0 0.0
    %1810 = vmatprep.subr.mxu0 0.0
    %1811 = vmatpush2.msra.mxu0 0.0
    %1812 = vmatprep.subr.mxu0 0.0
    %1813 = vmatpush2.msra.mxu0 0.0
    %1814 = vmatprep.subr.mxu0 0.0
    %1815 = vmatpush2.msra.mxu0 0.0
    %1816 = vmatprep.subr.mxu0 0.0
    %1817 = vmatpush2.msra.mxu0 0.0
    %1818 = vmatprep.subr.mxu0 0.0
    %1819 = vmatpush2.msra.mxu0 0.0
    %1820 = vmatprep.subr.mxu0 0.0
    %1821 = vmatpush2.msra.mxu0 0.0
    %1822 = vmatprep.subr.mxu0 0.0
    %1823 = vmatpush2.msra.mxu0 0.0
    %1824 = vmatprep.subr.mxu0 0.0
    %1825 = vmatpush2.msra.mxu0 0.0
    %1826 = vmatprep.subr.mxu0 0.0
    %1827 = vmatpush2.msra.mxu0 0.0
    %1828 = vmatprep.subr.mxu0 0.0
    %1829 = vmatpush2.msra.mxu0 0.0
    %1830 = vmatprep.subr.mxu0 0.0
    %1831 = vmatpush2.msra.mxu0 0.0
    %1832 = vmatprep.subr.mxu0 0.0
    %1833 = vmatpush2.msra.mxu0 0.0
    %1834 = vmatprep.subr.mxu0 0.0
    %1835 = vmatpush2.msra.mxu0 0.0
    %1836 = vmatprep.mubr.f32.mxu0 0.0
    %v1837 = vand.u32 %v1685, 4294901760
    %1838 = vmatmul.mubr.f32.gmra.mxu0 %v1837
    %v1839 = vpop.f32.mrf.mxu0
    %v1840 = vadd.f32 %v1764, %v1839
    %v1841 = vpop.f32.mrf.mxu0
    %1842 = vdwg.mxu0
    %1843 = vmatprep.subr.mxu0 0.0
    %1844 = vmatpush1.msra.mxu0 0.0
    %1845 = vmatprep.subr.mxu0 0.0
    %1846 = vmatpush1.msra.mxu0 0.0
    %1847 = vmatprep.subr.mxu0 0.0
    %1848 = vmatpush1.msra.mxu0 0.0
    %1849 = vmatprep.subr.mxu0 0.0
    %1850 = vmatpush1.msra.mxu0 0.0
    %1851 = vmatprep.subr.mxu0 0.0
    %1852 = vmatpush1.msra.mxu0 0.0
    %1853 = vmatprep.subr.mxu0 0.0
    %1854 = vmatpush1.msra.mxu0 0.0
    %1855 = vmatprep.subr.mxu0 0.0
    %1856 = vmatpush1.msra.mxu0 0.0
    %1857 = vmatprep.subr.mxu0 0.0
    %1858 = vmatpush1.msra.mxu0 0.0
    %1859 = vmatprep.subr.mxu0 0.0
    %1860 = vmatpush1.msra.mxu0 0.0
    %1861 = vmatprep.subr.mxu0 0.0
    %1862 = vmatpush1.msra.mxu0 0.0
    %1863 = vmatprep.subr.mxu0 0.0
    %1864 = vmatpush1.msra.mxu0 0.0
    %1865 = vmatprep.subr.mxu0 0.0
    %1866 = vmatpush1.msra.mxu0 0.0
    %1867 = vmatprep.subr.mxu0 0.0
    %1868 = vmatpush1.msra.mxu0 0.0
    %1869 = vmatprep.subr.mxu0 0.0
    %1870 = vmatpush1.msra.mxu0 0.0
    %1871 = vmatprep.subr.mxu0 0.0
    %1872 = vmatpush1.msra.mxu0 0.0
    %1873 = vmatprep.subr.mxu0 0.0
    %v1874 = vand.u32 %v1689, 4294901760
    %v1875 = vsub.f32 %v1689, %v1874
    %1876 = vmatpush1.msra.mxu0 %v1875
    %1877 = vmatprep.subr.mxu0 0.0
    %1878 = vmatpush2.msra.mxu0 0.0
    %1879 = vmatprep.subr.mxu0 0.0
    %1880 = vmatpush2.msra.mxu0 0.0
    %1881 = vmatprep.subr.mxu0 0.0
    %1882 = vmatpush2.msra.mxu0 0.0
    %1883 = vmatprep.subr.mxu0 0.0
    %1884 = vmatpush2.msra.mxu0 0.0
    %1885 = vmatprep.subr.mxu0 0.0
    %1886 = vmatpush2.msra.mxu0 0.0
    %1887 = vmatprep.subr.mxu0 0.0
    %1888 = vmatpush2.msra.mxu0 0.0
    %1889 = vmatprep.subr.mxu0 0.0
    %1890 = vmatpush2.msra.mxu0 0.0
    %1891 = vmatprep.subr.mxu0 0.0
    %1892 = vmatpush2.msra.mxu0 0.0
    %1893 = vmatprep.subr.mxu0 0.0
    %1894 = vmatpush2.msra.mxu0 0.0
    %1895 = vmatprep.subr.mxu0 0.0
    %1896 = vmatpush2.msra.mxu0 0.0
    %1897 = vmatprep.subr.mxu0 0.0
    %1898 = vmatpush2.msra.mxu0 0.0
    %1899 = vmatprep.subr.mxu0 0.0
    %1900 = vmatpush2.msra.mxu0 0.0
    %1901 = vmatprep.subr.mxu0 0.0
    %1902 = vmatpush2.msra.mxu0 0.0
    %1903 = vmatprep.subr.mxu0 0.0
    %1904 = vmatpush2.msra.mxu0 0.0
    %1905 = vmatprep.subr.mxu0 0.0
    %1906 = vmatpush2.msra.mxu0 0.0
    %1907 = vmatprep.subr.mxu0 0.0
    %1908 = vmatpush2.msra.mxu0 0.0
    %1909 = vmatprep.mubr.f32.mxu0 0.0
    %v1910 = vand.u32 %v1685, 4294901760
    %v1911 = vsub.f32 %v1685, %v1910
    %1912 = vmatmul.mubr.f32.gmra.mxu0 %v1911
    %v1913 = vpop.f32.mrf.mxu0
    %v1914 = vadd.f32 %v1840, %v1913
    %v1915 = vpop.f32.mrf.mxu0
    %1916 = vdwg.mxu0
    %1917 = vmatprep.subr.mxu0 0.0
    %1918 = vmatpush1.msra.mxu0 0.0
    %1919 = vmatprep.subr.mxu0 0.0
    %1920 = vmatpush1.msra.mxu0 0.0
    %1921 = vmatprep.subr.mxu0 0.0
    %1922 = vmatpush1.msra.mxu0 0.0
    %1923 = vmatprep.subr.mxu0 0.0
    %1924 = vmatpush1.msra.mxu0 0.0
    %1925 = vmatprep.subr.mxu0 0.0
    %1926 = vmatpush1.msra.mxu0 0.0
    %1927 = vmatprep.subr.mxu0 0.0
    %1928 = vmatpush1.msra.mxu0 0.0
    %1929 = vmatprep.subr.mxu0 0.0
    %1930 = vmatpush1.msra.mxu0 0.0
    %1931 = vmatprep.subr.mxu0 0.0
    %1932 = vmatpush1.msra.mxu0 0.0
    %1933 = vmatprep.subr.mxu0 0.0
    %1934 = vmatpush1.msra.mxu0 0.0
    %1935 = vmatprep.subr.mxu0 0.0
    %1936 = vmatpush1.msra.mxu0 0.0
    %1937 = vmatprep.subr.mxu0 0.0
    %1938 = vmatpush1.msra.mxu0 0.0
    %1939 = vmatprep.subr.mxu0 0.0
    %1940 = vmatpush1.msra.mxu0 0.0
    %1941 = vmatprep.subr.mxu0 0.0
    %1942 = vmatpush1.msra.mxu0 0.0
    %1943 = vmatprep.subr.mxu0 0.0
    %1944 = vmatpush1.msra.mxu0 0.0
    %1945 = vmatprep.subr.mxu0 0.0
    %1946 = vmatpush1.msra.mxu0 0.0
    %1947 = vmatprep.subr.mxu0 0.0
    %v1948 = vand.u32 %v1689, 4294901760
    %1949 = vmatpush1.msra.mxu0 %v1948
    %1950 = vmatprep.subr.mxu0 0.0
    %1951 = vmatpush2.msra.mxu0 0.0
    %1952 = vmatprep.subr.mxu0 0.0
    %1953 = vmatpush2.msra.mxu0 0.0
    %1954 = vmatprep.subr.mxu0 0.0
    %1955 = vmatpush2.msra.mxu0 0.0
    %1956 = vmatprep.subr.mxu0 0.0
    %1957 = vmatpush2.msra.mxu0 0.0
    %1958 = vmatprep.subr.mxu0 0.0
    %1959 = vmatpush2.msra.mxu0 0.0
    %1960 = vmatprep.subr.mxu0 0.0
    %1961 = vmatpush2.msra.mxu0 0.0
    %1962 = vmatprep.subr.mxu0 0.0
    %1963 = vmatpush2.msra.mxu0 0.0
    %1964 = vmatprep.subr.mxu0 0.0
    %1965 = vmatpush2.msra.mxu0 0.0
    %1966 = vmatprep.subr.mxu0 0.0
    %1967 = vmatpush2.msra.mxu0 0.0
    %1968 = vmatprep.subr.mxu0 0.0
    %1969 = vmatpush2.msra.mxu0 0.0
    %1970 = vmatprep.subr.mxu0 0.0
    %1971 = vmatpush2.msra.mxu0 0.0
    %1972 = vmatprep.subr.mxu0 0.0
    %1973 = vmatpush2.msra.mxu0 0.0
    %1974 = vmatprep.subr.mxu0 0.0
    %1975 = vmatpush2.msra.mxu0 0.0
    %1976 = vmatprep.subr.mxu0 0.0
    %1977 = vmatpush2.msra.mxu0 0.0
    %1978 = vmatprep.subr.mxu0 0.0
    %1979 = vmatpush2.msra.mxu0 0.0
    %1980 = vmatprep.subr.mxu0 0.0
    %1981 = vmatpush2.msra.mxu0 0.0
    %1982 = vmatprep.mubr.f32.mxu0 0.0
    %v1983 = vand.u32 %v1685, 4294901760
    %v1984 = vsub.f32 %v1685, %v1983
    %v1985 = vand.u32 %v1984, 4294901760
    %1986 = vmatmul.mubr.f32.gmra.mxu0 %v1985
    %v1987 = vpop.f32.mrf.mxu0
    %v1988 = vadd.f32 %v1914, %v1987
    %v1989 = vpop.f32.mrf.mxu0
    %1990 = vdwg.mxu0
    %1991 = vmatprep.subr.mxu0 0.0
    %1992 = vmatpush1.msra.mxu0 0.0
    %1993 = vmatprep.subr.mxu0 0.0
    %1994 = vmatpush1.msra.mxu0 0.0
    %1995 = vmatprep.subr.mxu0 0.0
    %1996 = vmatpush1.msra.mxu0 0.0
    %1997 = vmatprep.subr.mxu0 0.0
    %1998 = vmatpush1.msra.mxu0 0.0
    %1999 = vmatprep.subr.mxu0 0.0
    %2000 = vmatpush1.msra.mxu0 0.0
    %2001 = vmatprep.subr.mxu0 0.0
    %2002 = vmatpush1.msra.mxu0 0.0
    %2003 = vmatprep.subr.mxu0 0.0
    %2004 = vmatpush1.msra.mxu0 0.0
    %2005 = vmatprep.subr.mxu0 0.0
    %2006 = vmatpush1.msra.mxu0 0.0
    %2007 = vmatprep.subr.mxu0 0.0
    %2008 = vmatpush1.msra.mxu0 0.0
    %2009 = vmatprep.subr.mxu0 0.0
    %2010 = vmatpush1.msra.mxu0 0.0
    %2011 = vmatprep.subr.mxu0 0.0
    %2012 = vmatpush1.msra.mxu0 0.0
    %2013 = vmatprep.subr.mxu0 0.0
    %2014 = vmatpush1.msra.mxu0 0.0
    %2015 = vmatprep.subr.mxu0 0.0
    %2016 = vmatpush1.msra.mxu0 0.0
    %2017 = vmatprep.subr.mxu0 0.0
    %2018 = vmatpush1.msra.mxu0 0.0
    %2019 = vmatprep.subr.mxu0 0.0
    %2020 = vmatpush1.msra.mxu0 0.0
    %2021 = vmatprep.subr.mxu0 0.0
    %v2022 = vand.u32 %v1689, 4294901760
    %v2023 = vsub.f32 %v1689, %v2022
    %v2024 = vand.u32 %v2023, 4294901760
    %2025 = vmatpush1.msra.mxu0 %v2024
    %2026 = vmatprep.subr.mxu0 0.0
    %2027 = vmatpush2.msra.mxu0 0.0
    %2028 = vmatprep.subr.mxu0 0.0
    %2029 = vmatpush2.msra.mxu0 0.0
    %2030 = vmatprep.subr.mxu0 0.0
    %2031 = vmatpush2.msra.mxu0 0.0
    %2032 = vmatprep.subr.mxu0 0.0
    %2033 = vmatpush2.msra.mxu0 0.0
    %2034 = vmatprep.subr.mxu0 0.0
    %2035 = vmatpush2.msra.mxu0 0.0
    %2036 = vmatprep.subr.mxu0 0.0
    %2037 = vmatpush2.msra.mxu0 0.0
    %2038 = vmatprep.subr.mxu0 0.0
    %2039 = vmatpush2.msra.mxu0 0.0
    %2040 = vmatprep.subr.mxu0 0.0
    %2041 = vmatpush2.msra.mxu0 0.0
    %2042 = vmatprep.subr.mxu0 0.0
    %2043 = vmatpush2.msra.mxu0 0.0
    %2044 = vmatprep.subr.mxu0 0.0
    %2045 = vmatpush2.msra.mxu0 0.0
    %2046 = vmatprep.subr.mxu0 0.0
    %2047 = vmatpush2.msra.mxu0 0.0
    %2048 = vmatprep.subr.mxu0 0.0
    %2049 = vmatpush2.msra.mxu0 0.0
    %2050 = vmatprep.subr.mxu0 0.0
    %2051 = vmatpush2.msra.mxu0 0.0
    %2052 = vmatprep.subr.mxu0 0.0
    %2053 = vmatpush2.msra.mxu0 0.0
    %2054 = vmatprep.subr.mxu0 0.0
    %2055 = vmatpush2.msra.mxu0 0.0
    %2056 = vmatprep.subr.mxu0 0.0
    %2057 = vmatpush2.msra.mxu0 0.0
    %2058 = vmatprep.mubr.f32.mxu0 0.0
    %v2059 = vand.u32 %v1685, 4294901760
    %2060 = vmatmul.mubr.f32.gmra.mxu0 %v2059
    %v2061 = vpop.f32.mrf.mxu0
    %v2062 = vadd.f32 %v1988, %v2061
    %v2063 = vpop.f32.mrf.mxu0
    %2064 = vdwg.mxu0
    %2065 = vmatprep.subr.mxu0 0.0
    %2066 = vmatpush1.msra.mxu0 0.0
    %2067 = vmatprep.subr.mxu0 0.0
    %2068 = vmatpush1.msra.mxu0 0.0
    %2069 = vmatprep.subr.mxu0 0.0
    %2070 = vmatpush1.msra.mxu0 0.0
    %2071 = vmatprep.subr.mxu0 0.0
    %2072 = vmatpush1.msra.mxu0 0.0
    %2073 = vmatprep.subr.mxu0 0.0
    %2074 = vmatpush1.msra.mxu0 0.0
    %2075 = vmatprep.subr.mxu0 0.0
    %2076 = vmatpush1.msra.mxu0 0.0
    %2077 = vmatprep.subr.mxu0 0.0
    %2078 = vmatpush1.msra.mxu0 0.0
    %2079 = vmatprep.subr.mxu0 0.0
    %2080 = vmatpush1.msra.mxu0 0.0
    %2081 = vmatprep.subr.mxu0 0.0
    %2082 = vmatpush1.msra.mxu0 0.0
    %2083 = vmatprep.subr.mxu0 0.0
    %2084 = vmatpush1.msra.mxu0 0.0
    %2085 = vmatprep.subr.mxu0 0.0
    %2086 = vmatpush1.msra.mxu0 0.0
    %2087 = vmatprep.subr.mxu0 0.0
    %2088 = vmatpush1.msra.mxu0 0.0
    %2089 = vmatprep.subr.mxu0 0.0
    %2090 = vmatpush1.msra.mxu0 0.0
    %2091 = vmatprep.subr.mxu0 0.0
    %2092 = vmatpush1.msra.mxu0 0.0
    %2093 = vmatprep.subr.mxu0 0.0
    %2094 = vmatpush1.msra.mxu0 0.0
    %2095 = vmatprep.subr.mxu0 0.0
    %v2096 = vand.u32 %v1689, 4294901760
    %2097 = vmatpush1.msra.mxu0 %v2096
    %2098 = vmatprep.subr.mxu0 0.0
    %2099 = vmatpush2.msra.mxu0 0.0
    %2100 = vmatprep.subr.mxu0 0.0
    %2101 = vmatpush2.msra.mxu0 0.0
    %2102 = vmatprep.subr.mxu0 0.0
    %2103 = vmatpush2.msra.mxu0 0.0
    %2104 = vmatprep.subr.mxu0 0.0
    %2105 = vmatpush2.msra.mxu0 0.0
    %2106 = vmatprep.subr.mxu0 0.0
    %2107 = vmatpush2.msra.mxu0 0.0
    %2108 = vmatprep.subr.mxu0 0.0
    %2109 = vmatpush2.msra.mxu0 0.0
    %2110 = vmatprep.subr.mxu0 0.0
    %2111 = vmatpush2.msra.mxu0 0.0
    %2112 = vmatprep.subr.mxu0 0.0
    %2113 = vmatpush2.msra.mxu0 0.0
    %2114 = vmatprep.subr.mxu0 0.0
    %2115 = vmatpush2.msra.mxu0 0.0
    %2116 = vmatprep.subr.mxu0 0.0
    %2117 = vmatpush2.msra.mxu0 0.0
    %2118 = vmatprep.subr.mxu0 0.0
    %2119 = vmatpush2.msra.mxu0 0.0
    %2120 = vmatprep.subr.mxu0 0.0
    %2121 = vmatpush2.msra.mxu0 0.0
    %2122 = vmatprep.subr.mxu0 0.0
    %2123 = vmatpush2.msra.mxu0 0.0
    %2124 = vmatprep.subr.mxu0 0.0
    %2125 = vmatpush2.msra.mxu0 0.0
    %2126 = vmatprep.subr.mxu0 0.0
    %2127 = vmatpush2.msra.mxu0 0.0
    %2128 = vmatprep.subr.mxu0 0.0
    %2129 = vmatpush2.msra.mxu0 0.0
    %2130 = vmatprep.mubr.f32.mxu0 0.0
    %v2131 = vand.u32 %v1685, 4294901760
    %2132 = vmatmul.mubr.f32.gmra.mxu0 %v2131
    %v2133 = vpop.f32.mrf.mxu0
    %v2134 = vadd.f32 %v2062, %v2133
    %v2135 = vpop.f32.mrf.mxu0
    %2136 = vdwg.mxu0
    %2138 = vset.pattern.permute.xlu0 0
    %2139 = vperm.xlu0 %2138, %v2134
    %v2140 = vpop.permute.xlu0 %2139
    %v2142 = vmul.f32 %v1117, %v2140
    %v2143 = vmul.f32 %v1119, %v2140
    %v2144 = vmul.f32 %v1188, %v2140
    %v2145 = vmul.f32 %v1190, %v2140
    %2146 = vset.pattern.permute.xlu0 1
    %2147 = vperm.xlu0 %2146, %v2134
    %v2148 = vpop.permute.xlu0 %2147
    %v2150 = vadd.f32 %v2142, %v2148
    %v2151 = vadd.f32 %v2143, %v2148
    %v2152 = vadd.f32 %v2144, %v2148
    %v2153 = vadd.f32 %v2145, %v2148
    %v2154 = vsub.f32 0.0, %v2150
    %v2155 = vsub.f32 0.0, %v2151
    %v2156 = vsub.f32 0.0, %v2152
    %v2157 = vsub.f32 0.0, %v2153
    %v2158 = vmul.f32 %v2154, 1.442695
    %v2159 = vpow.pop %v2158
    %v2160 = vmul.f32 %v2155, 1.442695
    %v2161 = vpow.pop %v2160
    %v2162 = vmul.f32 %v2156, 1.442695
    %v2163 = vpow.pop %v2162
    %v2164 = vmul.f32 %v2157, 1.442695
    %v2165 = vpow.pop %v2164
    %v2166 = vadd.f32 %v2159, 1.0
    %v2167 = vadd.f32 %v2161, 1.0
    %v2168 = vadd.f32 %v2163, 1.0
    %v2169 = vadd.f32 %v2165, 1.0
    %v2170 = vrcp.pop %v2166
    %v2171 = vmul.f32 1.0, %v2170
    %v2172 = vrcp.pop %v2167
    %v2173 = vmul.f32 1.0, %v2172
    %v2174 = vrcp.pop %v2168
    %v2175 = vmul.f32 1.0, %v2174
    %v2176 = vrcp.pop %v2169
    %v2177 = vmul.f32 1.0, %v2176
    %v2178 = vmul.f32 %v103, %v2171
    %v2179 = vmul.f32 %v104, %v2173
    %v2180 = vmul.f32 %v105, %v2175
    %v2181 = vmul.f32 %v106, %v2177
    %v2182 = vadd.f32 %v2178, %v103
    %v2183 = vadd.f32 %v2179, %v104
    %v2184 = vadd.f32 %v2180, %v105
    %v2185 = vadd.f32 %v2181, %v106
    %v2186 = vadd.f32 %v2182, %v2183
    %v2187 = vadd.f32 %v2186, %v2184
    %v2188 = vadd.f32 %v2187, %v2185
    %2189 = vadd.xlane.f32.xlu0 %v2188
    %v2190 = vpop.xlane.xlu0 %2189
    %v2191 = vmul.f32 %v2190, 0.001953125
    %v2192 = vsub.f32 %v2182, %v2191
    %v2193 = vsub.f32 %v2183, %v2191
    %v2194 = vsub.f32 %v2184, %v2191
    %v2195 = vsub.f32 %v2185, %v2191
    %v2196 = vmul.f32 %v2192, %v2192
    %v2197 = vmul.f32 %v2193, %v2193
    %v2198 = vmul.f32 %v2194, %v2194
    %v2199 = vmul.f32 %v2195, %v2195
    %v2200 = vadd.f32 %v2196, %v2197
    %v2201 = vadd.f32 %v2200, %v2198
    %v2202 = vadd.f32 %v2201, %v2199
    %2203 = vadd.xlane.f32.xlu0 %v2202
    %v2204 = vpop.xlane.xlu0 %2203
    %v2205 = vmul.f32 %v2204, 0.0019569471
    %v2206 = vadd.f32 %v2205, 0.0001
    %v2207 = vmul.f32 %v2206, 4.0
    %v2208 = vrcp.pop %v2207
    %v2209 = vmul.f32 1.0, %v2208
    %v2210 = vmul.f32 %v2196, %v2209
    %v2211 = vmul.f32 %v2197, %v2209
    %v2212 = vmul.f32 %v2198, %v2209
    %v2213 = vmul.f32 %v2199, %v2209
    %v2214 = vadd.f32 %v2210, 0.5
    %v2215 = vadd.f32 %v2211, 0.5
    %v2216 = vadd.f32 %v2212, 0.5
    %v2217 = vadd.f32 %v2213, 0.5
    %v2218 = vsub.f32 0.0, %v2214
    %v2219 = vsub.f32 0.0, %v2215
    %v2220 = vsub.f32 0.0, %v2216
    %v2221 = vsub.f32 0.0, %v2217
    %v2222 = vmul.f32 %v2218, 1.442695
    %v2223 = vpow.pop %v2222
    %v2224 = vmul.f32 %v2219, 1.442695
    %v2225 = vpow.pop %v2224
    %v2226 = vmul.f32 %v2220, 1.442695
    %v2227 = vpow.pop %v2226
    %v2228 = vmul.f32 %v2221, 1.442695
    %v2229 = vpow.pop %v2228
    %v2230 = vadd.f32 %v2223, 1.0
    %v2231 = vadd.f32 %v2225, 1.0
    %v2232 = vadd.f32 %v2227, 1.0
    %v2233 = vadd.f32 %v2229, 1.0
    %v2234 = vrcp.pop %v2230
    %v2235 = vmul.f32 1.0, %v2234
    %v2236 = vrcp.pop %v2231
    %v2237 = vmul.f32 1.0, %v2236
    %v2238 = vrcp.pop %v2232
    %v2239 = vmul.f32 1.0, %v2238
    %v2240 = vrcp.pop %v2233
    %v2241 = vmul.f32 1.0, %v2240
    %v2242 = vmul.f32 %v2182, %v2235
    %v2243 = vmul.f32 %v2183, %v2237
    %v2244 = vmul.f32 %v2184, %v2239
    %v2245 = vmul.f32 %v2185, %v2241
    %2246 = vst [vmem:[%s8] sm:$0xff] %v2242
    %2247 = vst [vmem:[%s8 + $0x8] sm:$0xff] %v2243
    %2248 = vst [vmem:[%s8 + $0x10] sm:$0xff] %v2244
    %2249 = vst [vmem:[%s8 + $0x18] sm:$0xff] %v2245
    // Predicated region
    $region38: #{forward.1} parent=1 // pred_check
      _
    $region39: #{forward.1} parent=1 // pred_check_branch
      %2251 = sbr.rel (0) target = $region41
    $region40: #{forward.1} parent=1 // pred_region
      _
    $region41: #{forward.1} parent=1 // pred_fallthru
      _
    // Predicated region
    $region42: #{forward.1} parent=1 // pred_check
      _
    $region43: #{forward.1} parent=1 // pred_check_branch
      %2253 = sbr.rel (0) target = $region45
    $region44: #{forward.1} parent=1 // pred_region
      _
    $region45: #{forward.1} parent=1 // pred_fallthru
      _
    %2254 = vsyncpa [#allocation3], 1

</llo_original>
